<compile_context>
chip_gen: v5e
topology: v5e:2x2
jax: 0.10.0
libtpu: 0.0.40
codegen_flags: <defaults>
</compile_context>

<pallas_src>
import functools

import jax
import jax.numpy as jnp
from jax import lax
from jax.experimental import pallas as pl
from jax.experimental.pallas import tpu as pltpu


_SINGLE_STEP_VMEM_BUDGET = 40 * 1024 * 1024   # conservative vs v7x 64 MiB physical VMEM
_VMEM_LIMIT_BYTES = 48 * 1024 * 1024          # explicit scoped-VMEM limit (v5e default is 16 MiB)


# ------------------------------ Pallas kernel -------------------------------

def _fused_conv_bn_act_kernel(xp_ref, w_ref, g_ref, b_ref, *rest,
                              eps, inv_count, relu, has_res, m_tiles, tile_m):
    """Fused ConvBlock step: conv-as-matmul -> BatchNorm(batch stats) -> [+res] -> [ReLU].

    Output layout (Cout, M): Cout on sublanes (multiple of 8 here), M = N*Do*Ho*Wo on the
    lane axis -> every store is a full-lane, lane-dense vst.
    """
    if has_res:
        res_ref, o_ref = rest
    else:
        (o_ref,) = rest

    def _bn_act(y):
        # Two-pass biased batch variance over the lane axis (all of N and space),
        # folded scale/bias, optional residual add and block ReLU.
        mean = jnp.sum(y, axis=1, keepdims=True) * inv_count          # (Cout, 1)
        d = y - mean
        var = jnp.sum(d * d, axis=1, keepdims=True) * inv_count
        scale = g_ref[...] * lax.rsqrt(var + eps)                     # EUP rsqrt (free slot)
        bias = b_ref[...] - mean * scale
        z = y * scale + bias
        if has_res:
            z = z + res_ref[...]
        if relu:
            z = jnp.maximum(z, 0.0)
        return z

    if m_tiles == 1:
        # Whole problem VMEM-resident: one lane-dense MXU matmul with the batch folded
        # into the RHS lane axis, unconditional finalize.  Single grid step -> no pl.when,
        # no dynamic-index stores, no per-step pipeline overhead (perf-review item #1).
        y = jnp.dot(w_ref[...], xp_ref[...], preferred_element_type=jnp.float32)
        o_ref[...] = _bn_act(y)
    else:
        # Lane-tiled fallback: xp streamed over M tiles, output (+ residual) VMEM-resident,
        # BN/act finalize on the last step over the resident result.
        # CORRECTNESS TIE: this reads earlier steps' results out of the resident output
        # block, which is only valid because the grid axis is "arbitrary" (sequential) and
        # the out BlockSpec index is constant.  Do NOT flip to "parallel" (v7x megacore)
        # without switching to per-core partial sums/sumsq + a cross-core combine.
        m = pl.program_id(0)
        start = pl.multiple_of(m * tile_m, 128)
        o_ref[:, pl.ds(start, tile_m)] = jnp.dot(
            w_ref[...], xp_ref[...], preferred_element_type=jnp.float32)

        @pl.when(m == pl.num_programs(0) - 1)
        def _():
            o_ref[...] = _bn_act(o_ref[...])


# ------------------------------ kernel wrapper -------------------------------

def _auto_m_tiles(k_dim, m_dim, cout, has_res):
    """1 (whole problem VMEM-resident, single step) if it fits the budget, else lane tiles."""
    in_bytes = 4 * (k_dim * m_dim + cout * k_dim + 2 * cout + (cout * m_dim if has_res else 0))
    out_bytes = 4 * cout * m_dim
    if 2 * in_bytes + 2 * out_bytes <= _SINGLE_STEP_VMEM_BUDGET:   # worst case: all double-buffered
        return 1
    # TODO(synk): if the resident (Cout, M) output itself blows the budget (huge activations),
    # a partial-sum/sumsq two-pass scheme (and a v7x megacore split) is required instead.
    tile_m = m_dim
    while tile_m % 256 == 0 and 8 * k_dim * tile_m > (8 << 20):    # keep 2x f32 xp tile <= 8 MiB
        tile_m //= 2
    return m_dim // tile_m


def fused_conv_bn_act(xp, w_mat, gamma, beta, res=None, *, relu, eps=1e-5, m_tiles=None):
    """out = act(BN_train(w_mat @ xp) [+ res]) as ONE pallas_call.

    xp:    (K, M) f32 im2col patches, M = N*Do*Ho*Wo on the lane axis (channel-major).
    w_mat: (Cout, K) flattened conv weight.  gamma/beta: (Cout,).  res: optional (Cout, M).
    """
    K, M = xp.shape
    Cout = w_mat.shape[0]
    has_res = res is not None

    # Pad the contraction dim to a sublane multiple (zero rows/cols do not change the dot).
    K_pad = (K + 7) // 8 * 8
    if K_pad != K:
        xp = jnp.pad(xp, ((0, K_pad - K), (0, 0)))
        w_mat = jnp.pad(w_mat, ((0, 0), (0, K_pad - K)))

    if m_tiles is None:
        m_tiles = _auto_m_tiles(K_pad, M, Cout, has_res)
    assert M % m_tiles == 0, (M, m_tiles)
    tile_m = M // m_tiles
    assert m_tiles == 1 or tile_m % 128 == 0, tile_m

    xp = xp.astype(jnp.float32)
    w_mat = w_mat.astype(jnp.float32)
    g2 = gamma.reshape(Cout, 1).astype(jnp.float32)
    b2 = beta.reshape(Cout, 1).astype(jnp.float32)

    operands = [xp, w_mat, g2, b2]
    in_specs = [
        pl.BlockSpec((K_pad, tile_m), lambda m: (0, m)),   # patches: streamed over lane tiles
        pl.BlockSpec((Cout, K_pad), lambda m: (0, 0)),     # weights: resident
        pl.BlockSpec((Cout, 1), lambda m: (0, 0)),         # gamma
        pl.BlockSpec((Cout, 1), lambda m: (0, 0)),         # beta
    ]
    if has_res:
        operands.append(res.astype(jnp.float32))
        in_specs.append(pl.BlockSpec((Cout, M), lambda m: (0, 0)))   # residual: resident

    kernel = functools.partial(
        _fused_conv_bn_act_kernel,
        eps=float(eps), inv_count=1.0 / float(M), relu=relu, has_res=has_res,
        m_tiles=m_tiles, tile_m=tile_m)

    bytes_accessed = 4 * (xp.size + w_mat.size + g2.size + b2.size
                          + (Cout * M if has_res else 0) + Cout * M)

    # TODO(synk): optional bf16 cast of xp/w_mat (keep f32 accumulation + f32 BN math) would
    # halve DMA traffic and double MXU rate; only worth wiring at production sizes.
    return pl.pallas_call(
        kernel,
        out_shape=jax.ShapeDtypeStruct((Cout, M), jnp.float32),
        grid=(m_tiles,),
        in_specs=in_specs,
        out_specs=pl.BlockSpec((Cout, M), lambda m: (0, 0)),   # resident, one HBM writeback
        compiler_params=pltpu.CompilerParams(
            # "arbitrary": resident-output accumulation + finalize requires sequential steps.
            dimension_semantics=("arbitrary",),
            vmem_limit_bytes=_VMEM_LIMIT_BYTES,
        ),
        cost_estimate=pl.CostEstimate(
            flops=2 * Cout * K_pad * M,
            transcendentals=Cout,
            bytes_accessed=bytes_accessed),
    )(*operands)


# --------------------------- LayerBasic (channel-major) ----------------------

def _im2col_cmajor(xc, k, stride, pad):
    """Channel-major im2col: (C, N, D, H, W) -> ((C*k^3), N*Do*Ho*Wo).
    Row order (cin, kd, kh, kw) matches conv_w.reshape(Cout, Cin*k^3).
    NOTE: accepted HBM materialization of the patches (perf-review item #2);
    TODO(synk): fuse im2col into the producer for production-size activations."""
    C, N, D, H, W = xc.shape
    Do = (D + 2 * pad - k) // stride + 1
    Ho = (H + 2 * pad - k) // stride + 1
    Wo = (W + 2 * pad - k) // stride + 1
    if pad > 0:
        xc = jnp.pad(xc, ((0, 0), (0, 0), (pad, pad), (pad, pad), (pad, pad)))
    cols = []
    for kd in range(k):
        for kh in range(k):
            for kw in range(k):
                cols.append(xc[:, :,
                               kd:kd + (Do - 1) * stride + 1:stride,
                               kh:kh + (Ho - 1) * stride + 1:stride,
                               kw:kw + (Wo - 1) * stride + 1:stride])
    xp = jnp.stack(cols, axis=1)                        # (C, k^3, N, Do, Ho, Wo)
    return xp.reshape(C * k * k * k, N * Do * Ho * Wo), (Do, Ho, Wo)


def _avgpool2_cmajor(xc):
    """AvgPool3d(kernel=2, stride=2) on channel-major (C, N, D, H, W)."""
    C, N, D, H, W = xc.shape
    return xc.reshape(C, N, D // 2, 2, H // 2, 2, W // 2, 2).mean(axis=(3, 5, 7))


def conv_block(xc, p, *, stride=1, relu=True, res=None, eps=1e-5, m_tiles=None):
    """ConvBlock (conv k, pad=k//2, bias=False -> BN batch stats -> optional ReLU),
    optionally fusing a residual add before the activation.  Channel-major activations."""
    w = p["w"]
    Cout, Cin, k = w.shape[0], w.shape[1], w.shape[2]
    xp, (Do, Ho, Wo) = _im2col_cmajor(xc, k, stride, k // 2)
    res_flat = None if res is None else res.reshape(Cout, -1)
    y = fused_conv_bn_act(xp, w.reshape(Cout, Cin * k * k * k), p["g"], p["b"],
                          res=res_flat, relu=relu, eps=eps, m_tiles=m_tiles)
    return y.reshape(Cout, xc.shape[1], Do, Ho, Wo)


def basic_block(xc, p, *, stride=1, eps=1e-5, m_tiles=None):
    """BasicBlockNew.forward with se=False: ident = res(x); conv1; conv2(+ident); ReLU."""
    if p["res"] is None:
        ident = xc
    else:
        xi = _avgpool2_cmajor(xc) if stride > 1 else xc        # AvgPool3d(2,2) branch
        ident = conv_block(xi, p["res"], stride=1, relu=False, eps=eps, m_tiles=m_tiles)
    h = conv_block(xc, p["conv1"], stride=stride, relu=True, eps=eps, m_tiles=m_tiles)
    # conv2 (act='none') + BN + residual add + block ReLU fused into one kernel.
    # TODO(synk): SELayer (se=True) not implemented — LayerBasic default is se=False.
    return conv_block(h, p["conv2"], stride=1, relu=True, res=ident, eps=eps,
                      m_tiles=m_tiles)


def layer_basic(x, params, *, stride=1, eps=1e-5, m_tiles=None):
    """LayerBasic.forward: n_stages BasicBlockNew blocks (batchnorm, ReLU, se=False).
    Layout transposes happen exactly once at entry and once at exit."""
    xc = jnp.transpose(x, (1, 0, 2, 3, 4)).astype(jnp.float32)   # (C, N, D, H, W)
    for i, p in enumerate(params):
        xc = basic_block(xc, p, stride=(stride if i == 0 else 1), eps=eps, m_tiles=m_tiles)
    return jnp.transpose(xc, (1, 0, 2, 3, 4))                    # back to NCDHW


# ------------------------------ params & reference ---------------------------

def init_layer_basic_params(key, n_stages, in_channels, out_channels, stride):
    def conv_w(k, cout, cin, ks):
        fan_in = cin * ks ** 3
        bound = 1.0 / float(fan_in) ** 0.5
        return jax.random.uniform(k, (cout, cin, ks, ks, ks), jnp.float32, -bound, bound)

    def bn(k):
        k1, k2 = jax.random.split(k)
        return (1.0 + 0.1 * jax.random.normal(k1, (out_channels,), jnp.float32),
                0.1 * jax.random.normal(k2, (out_channels,), jnp.float32))

    params = []
    for i in range(n_stages):
        cin = in_channels if i == 0 else out_channels
        s = stride if i == 0 else 1
        key, kc1, kb1, kc2, kb2, kcr, kbr = jax.random.split(key, 7)
        g1, b1 = bn(kb1)
        g2, b2 = bn(kb2)
        blk = {"conv1": {"w": conv_w(kc1, out_channels, cin, 3), "g": g1, "b": b1},
               "conv2": {"w": conv_w(kc2, out_channels, out_channels, 3), "g": g2, "b": b2},
               "res": None}
        if not (cin == out_channels and s == 1):
            gr, br = bn(kbr)
            blk["res"] = {"w": conv_w(kcr, out_channels, cin, 1), "g": gr, "b": br}
        params.append(blk)
    return params


def _conv_bn_ref(x, w, g, b, stride, relu, eps):
    k = w.shape[-1]
    pad = k // 2
    y = lax.conv_general_dilated(
        x, w, window_strides=(stride, stride, stride), padding=[(pad, pad)] * 3,
        dimension_numbers=("NCDHW", "OIDHW", "NCDHW"),
        precision=lax.Precision.HIGHEST)
    mean = jnp.mean(y, axis=(0, 2, 3, 4), keepdims=True)
    var = jnp.mean(jnp.square(y - mean), axis=(0, 2, 3, 4), keepdims=True)
    y = (y - mean) / jnp.sqrt(var + eps) * g.reshape(1, -1, 1, 1, 1) + b.reshape(1, -1, 1, 1, 1)
    return jnp.maximum(y, 0.0) if relu else y


def _avgpool2_ref(x):
    N, C, D, H, W = x.shape
    return x.reshape(N, C, D // 2, 2, H // 2, 2, W // 2, 2).mean(axis=(3, 5, 7))


def layer_basic_reference(x, params, *, stride=1, eps=1e-5):
    for i, p in enumerate(params):
        s = stride if i == 0 else 1
        if p["res"] is None:
            ident = x
        else:
            xi = _avgpool2_ref(x) if s > 1 else x
            ident = _conv_bn_ref(xi, p["res"]["w"], p["res"]["g"], p["res"]["b"], 1, False, eps)
        h = _conv_bn_ref(x, p["conv1"]["w"], p["conv1"]["g"], p["conv1"]["b"], s, True, eps)
        y = _conv_bn_ref(h, p["conv2"]["w"], p["conv2"]["g"], p["conv2"]["b"], 1, False, eps)
        x = jnp.maximum(y + ident, 0.0)
    return x


# ------------------------------------ main ------------------------------------

if __name__ == "__main__":
    key = jax.random.PRNGKey(0)
    k_x, k_p = jax.random.split(key)

    # LayerBasic(n_stages=2, in_channels=4, out_channels=8, stride=2, se=False):
    # block 0 exercises stride-2 conv1 + (AvgPool3d + 1x1 ConvBlock) residual,
    # block 1 exercises the identity residual.
    N, Cin, Cout, D = 2, 4, 8, 16
    n_stages, stride = 2, 2
    x = jax.random.normal(k_x, (N, Cin, D, D, D), dtype=jnp.float32)
    params = init_layer_basic_params(k_p, n_stages, Cin, Cout, stride)

    out = jax.block_until_ready(
        jax.jit(lambda v: layer_basic(v, params, stride=stride))(x))
    ref = layer_basic_reference(x, params, stride=stride)

    assert out.shape == ref.shape == (N, Cout, D // 2, D // 2, D // 2)
    assert jnp.allclose(out, ref, rtol=1e-3, atol=1e-3), "mismatch (single-step path)"

    # Also exercise the lane-tiled fallback path (streamed xp, resident output, guarded
    # finalize) that the wrapper would pick automatically above the VMEM budget.
    out_tiled = jax.block_until_ready(
        jax.jit(lambda v: layer_basic(v, params, stride=stride, m_tiles=4))(x))
    assert jnp.allclose(out_tiled, ref, rtol=1e-3, atol=1e-3), "mismatch (tiled path)"

    print("KERNEL_OK")
</pallas_src>

<mosaic_0001>
module attributes {stable_mosaic.version = 11 : i64} {
  func.func @_fused_conv_bn_act_kernel(%arg0: i32, %arg1: memref<8x1024xf32, #tpu.memory_space<vmem>>, %arg2: memref<8x8xf32, #tpu.memory_space<vmem>>, %arg3: memref<8x1xf32, #tpu.memory_space<vmem>>, %arg4: memref<8x1xf32, #tpu.memory_space<vmem>>, %arg5: memref<8x1024xf32, #tpu.memory_space<vmem>>) attributes {dimension_semantics = [#tpu.dimension_semantics<arbitrary>], iteration_bounds = array<i64: 1>, scalar_prefetch = 0 : i64, scratch_operands = 0 : i64, tpu.core_type = #tpu.core_type<tc>, window_params = [{transform_indices = @transform_0, window_bounds = array<i64: 8, 1024>}, {pipeline_mode = #tpu.pipeline_mode<synchronous>, transform_indices = @transform_1, window_bounds = array<i64: 8, 8>}, {pipeline_mode = #tpu.pipeline_mode<synchronous>, transform_indices = @transform_2, window_bounds = array<i64: 8, 1>}, {pipeline_mode = #tpu.pipeline_mode<synchronous>, transform_indices = @transform_3, window_bounds = array<i64: 8, 1>}, {pipeline_mode = #tpu.pipeline_mode<synchronous>, transform_indices = @transform_4, window_bounds = array<i64: 8, 1024>}]} {
    %c0 = arith.constant 0 : index
    %c0_0 = arith.constant 0 : index
    %0 = vector.load %arg2[%c0, %c0_0] : memref<8x8xf32, #tpu.memory_space<vmem>>, vector<8x8xf32>
    %c0_1 = arith.constant 0 : index
    %c0_2 = arith.constant 0 : index
    %1 = vector.load %arg1[%c0_1, %c0_2] : memref<8x1024xf32, #tpu.memory_space<vmem>>, vector<8x1024xf32>
    %cst = arith.constant dense<0.000000e+00> : vector<8x1024xf32>
    %2 = tpu.matmul %0, %1, %cst {dimension_numbers = #tpu.dot_dimension_numbers<[1], [0], [0], [1], [0, 0, 1, 1], [], []>} : vector<8x8xf32>, vector<8x1024xf32>, vector<8x1024xf32> -> vector<8x1024xf32>
    %cst_3 = arith.constant dense<0.000000e+00> : vector<8xf32>
    %3 = vector.multi_reduction <add>, %2, %cst_3 [1] : vector<8x1024xf32> to vector<8xf32>
    %4 = vector.shape_cast %3 : vector<8xf32> to vector<8x1xf32>
    %cst_4 = arith.constant 9.765625E-4 : f32
    %5 = vector.broadcast %cst_4 : f32 to vector<8x1xf32>
    %6 = arith.mulf %4, %5 : vector<8x1xf32>
    %7 = vector.broadcast %6 : vector<8x1xf32> to vector<8x1024xf32>
    %8 = arith.subf %2, %7 : vector<8x1024xf32>
    %9 = arith.mulf %8, %8 : vector<8x1024xf32>
    %cst_5 = arith.constant dense<0.000000e+00> : vector<8xf32>
    %10 = vector.multi_reduction <add>, %9, %cst_5 [1] : vector<8x1024xf32> to vector<8xf32>
    %11 = vector.shape_cast %10 : vector<8xf32> to vector<8x1xf32>
    %cst_6 = arith.constant 9.765625E-4 : f32
    %12 = vector.broadcast %cst_6 : f32 to vector<8x1xf32>
    %13 = arith.mulf %11, %12 : vector<8x1xf32>
    %c0_7 = arith.constant 0 : index
    %c0_8 = arith.constant 0 : index
    %14 = vector.load %arg3[%c0_7, %c0_8] : memref<8x1xf32, #tpu.memory_space<vmem>>, vector<8x1xf32>
    %cst_9 = arith.constant 9.99999974E-6 : f32
    %15 = vector.broadcast %cst_9 : f32 to vector<8x1xf32>
    %16 = arith.addf %13, %15 : vector<8x1xf32>
    %17 = math.rsqrt %16 : vector<8x1xf32>
    %18 = arith.mulf %14, %17 : vector<8x1xf32>
    %c0_10 = arith.constant 0 : index
    %c0_11 = arith.constant 0 : index
    %19 = vector.load %arg4[%c0_10, %c0_11] : memref<8x1xf32, #tpu.memory_space<vmem>>, vector<8x1xf32>
    %20 = arith.mulf %6, %18 : vector<8x1xf32>
    %21 = arith.subf %19, %20 : vector<8x1xf32>
    %22 = vector.broadcast %18 : vector<8x1xf32> to vector<8x1024xf32>
    %23 = arith.mulf %2, %22 : vector<8x1024xf32>
    %24 = vector.broadcast %21 : vector<8x1xf32> to vector<8x1024xf32>
    %25 = arith.addf %23, %24 : vector<8x1024xf32>
    %c0_12 = arith.constant 0 : index
    %c0_13 = arith.constant 0 : index
    %26 = vector.load %arg5[%c0_12, %c0_13] : memref<8x1024xf32, #tpu.memory_space<vmem>>, vector<8x1024xf32>
    tpu.vector_store %arg5[%c0_12, %c0_13], %25 {strides = array<i32>} : memref<8x1024xf32, #tpu.memory_space<vmem>>, vector<8x1024xf32>,
    return
  }
  func.func @transform_0(%arg0: i32) -> (i32, i32) {
    %c0_i32 = arith.constant 0 : i32
    %c0_i32_0 = arith.constant 0 : i32
    return %c0_i32, %arg0 : i32, i32
  }
  func.func @transform_1(%arg0: i32) -> (i32, i32) {
    %c0_i32 = arith.constant 0 : i32
    %c0_i32_0 = arith.constant 0 : i32
    %c0_i32_1 = arith.constant 0 : i32
    return %c0_i32, %c0_i32_0 : i32, i32
  }
  func.func @transform_2(%arg0: i32) -> (i32, i32) {
    %c0_i32 = arith.constant 0 : i32
    %c0_i32_0 = arith.constant 0 : i32
    %c0_i32_1 = arith.constant 0 : i32
    return %c0_i32, %c0_i32_0 : i32, i32
  }
  func.func @transform_3(%arg0: i32) -> (i32, i32) {
    %c0_i32 = arith.constant 0 : i32
    %c0_i32_0 = arith.constant 0 : i32
    %c0_i32_1 = arith.constant 0 : i32
    return %c0_i32, %c0_i32_0 : i32, i32
  }
  func.func @transform_4(%arg0: i32) -> (i32, i32) {
    %c0_i32 = arith.constant 0 : i32
    %c0_i32_0 = arith.constant 0 : i32
    %c0_i32_1 = arith.constant 0 : i32
    return %c0_i32, %c0_i32_0 : i32, i32
  }
}

module attributes {stable_mosaic.version = 11 : i64} {
  func.func @_fused_conv_bn_act_kernel(%arg0: i32, %arg1: memref<112x1024xf32, #tpu.memory_space<vmem>>, %arg2: memref<8x112xf32, #tpu.memory_space<vmem>>, %arg3: memref<8x1xf32, #tpu.memory_space<vmem>>, %arg4: memref<8x1xf32, #tpu.memory_space<vmem>>, %arg5: memref<8x1024xf32, #tpu.memory_space<vmem>>) attributes {dimension_semantics = [#tpu.dimension_semantics<arbitrary>], iteration_bounds = array<i64: 1>, scalar_prefetch = 0 : i64, scratch_operands = 0 : i64, tpu.core_type = #tpu.core_type<tc>, window_params = [{transform_indices = @transform_0, window_bounds = array<i64: 112, 1024>}, {pipeline_mode = #tpu.pipeline_mode<synchronous>, transform_indices = @transform_1, window_bounds = array<i64: 8, 112>}, {pipeline_mode = #tpu.pipeline_mode<synchronous>, transform_indices = @transform_2, window_bounds = array<i64: 8, 1>}, {pipeline_mode = #tpu.pipeline_mode<synchronous>, transform_indices = @transform_3, window_bounds = array<i64: 8, 1>}, {pipeline_mode = #tpu.pipeline_mode<synchronous>, transform_indices = @transform_4, window_bounds = array<i64: 8, 1024>}]} {
    %c0 = arith.constant 0 : index
    %c0_0 = arith.constant 0 : index
    %0 = vector.load %arg2[%c0, %c0_0] : memref<8x112xf32, #tpu.memory_space<vmem>>, vector<8x112xf32>
    %c0_1 = arith.constant 0 : index
    %c0_2 = arith.constant 0 : index
    %1 = vector.load %arg1[%c0_1, %c0_2] : memref<112x1024xf32, #tpu.memory_space<vmem>>, vector<112x1024xf32>
    %cst = arith.constant dense<0.000000e+00> : vector<8x1024xf32>
    %2 = tpu.matmul %0, %1, %cst {dimension_numbers = #tpu.dot_dimension_numbers<[1], [0], [0], [1], [0, 0, 1, 1], [], []>} : vector<8x112xf32>, vector<112x1024xf32>, vector<8x1024xf32> -> vector<8x1024xf32>
    %cst_3 = arith.constant dense<0.000000e+00> : vector<8xf32>
    %3 = vector.multi_reduction <add>, %2, %cst_3 [1] : vector<8x1024xf32> to vector<8xf32>
    %4 = vector.shape_cast %3 : vector<8xf32> to vector<8x1xf32>
    %cst_4 = arith.constant 9.765625E-4 : f32
    %5 = vector.broadcast %cst_4 : f32 to vector<8x1xf32>
    %6 = arith.mulf %4, %5 : vector<8x1xf32>
    %7 = vector.broadcast %6 : vector<8x1xf32> to vector<8x1024xf32>
    %8 = arith.subf %2, %7 : vector<8x1024xf32>
    %9 = arith.mulf %8, %8 : vector<8x1024xf32>
    %cst_5 = arith.constant dense<0.000000e+00> : vector<8xf32>
    %10 = vector.multi_reduction <add>, %9, %cst_5 [1] : vector<8x1024xf32> to vector<8xf32>
    %11 = vector.shape_cast %10 : vector<8xf32> to vector<8x1xf32>
    %cst_6 = arith.constant 9.765625E-4 : f32
    %12 = vector.broadcast %cst_6 : f32 to vector<8x1xf32>
    %13 = arith.mulf %11, %12 : vector<8x1xf32>
    %c0_7 = arith.constant 0 : index
    %c0_8 = arith.constant 0 : index
    %14 = vector.load %arg3[%c0_7, %c0_8] : memref<8x1xf32, #tpu.memory_space<vmem>>, vector<8x1xf32>
    %cst_9 = arith.constant 9.99999974E-6 : f32
    %15 = vector.broadcast %cst_9 : f32 to vector<8x1xf32>
    %16 = arith.addf %13, %15 : vector<8x1xf32>
    %17 = math.rsqrt %16 : vector<8x1xf32>
    %18 = arith.mulf %14, %17 : vector<8x1xf32>
    %c0_10 = arith.constant 0 : index
    %c0_11 = arith.constant 0 : index
    %19 = vector.load %arg4[%c0_10, %c0_11] : memref<8x1xf32, #tpu.memory_space<vmem>>, vector<8x1xf32>
    %20 = arith.mulf %6, %18 : vector<8x1xf32>
    %21 = arith.subf %19, %20 : vector<8x1xf32>
    %22 = vector.broadcast %18 : vector<8x1xf32> to vector<8x1024xf32>
    %23 = arith.mulf %2, %22 : vector<8x1024xf32>
    %24 = vector.broadcast %21 : vector<8x1xf32> to vector<8x1024xf32>
    %25 = arith.addf %23, %24 : vector<8x1024xf32>
    %cst_12 = arith.constant 0.000000e+00 : f32
    %26 = vector.broadcast %cst_12 : f32 to vector<8x1024xf32>
    %27 = arith.maximumf %25, %26 : vector<8x1024xf32>
    %c0_13 = arith.constant 0 : index
    %c0_14 = arith.constant 0 : index
    %28 = vector.load %arg5[%c0_13, %c0_14] : memref<8x1024xf32, #tpu.memory_space<vmem>>, vector<8x1024xf32>
    tpu.vector_store %arg5[%c0_13, %c0_14], %27 {strides = array<i32>} : memref<8x1024xf32, #tpu.memory_space<vmem>>, vector<8x1024xf32>,
    return
  }
  func.func @transform_0(%arg0: i32) -> (i32, i32) {
    %c0_i32 = arith.constant 0 : i32
    %c0_i32_0 = arith.constant 0 : i32
    return %c0_i32, %arg0 : i32, i32
  }
  func.func @transform_1(%arg0: i32) -> (i32, i32) {
    %c0_i32 = arith.constant 0 : i32
    %c0_i32_0 = arith.constant 0 : i32
    %c0_i32_1 = arith.constant 0 : i32
    return %c0_i32, %c0_i32_0 : i32, i32
  }
  func.func @transform_2(%arg0: i32) -> (i32, i32) {
    %c0_i32 = arith.constant 0 : i32
    %c0_i32_0 = arith.constant 0 : i32
    %c0_i32_1 = arith.constant 0 : i32
    return %c0_i32, %c0_i32_0 : i32, i32
  }
  func.func @transform_3(%arg0: i32) -> (i32, i32) {
    %c0_i32 = arith.constant 0 : i32
    %c0_i32_0 = arith.constant 0 : i32
    %c0_i32_1 = arith.constant 0 : i32
    return %c0_i32, %c0_i32_0 : i32, i32
  }
  func.func @transform_4(%arg0: i32) -> (i32, i32) {
    %c0_i32 = arith.constant 0 : i32
    %c0_i32_0 = arith.constant 0 : i32
    %c0_i32_1 = arith.constant 0 : i32
    return %c0_i32, %c0_i32_0 : i32, i32
  }
}

module attributes {stable_mosaic.version = 11 : i64} {
  func.func @_fused_conv_bn_act_kernel(%arg0: i32, %arg1: memref<216x1024xf32, #tpu.memory_space<vmem>>, %arg2: memref<8x216xf32, #tpu.memory_space<vmem>>, %arg3: memref<8x1xf32, #tpu.memory_space<vmem>>, %arg4: memref<8x1xf32, #tpu.memory_space<vmem>>, %arg5: memref<8x1024xf32, #tpu.memory_space<vmem>>, %arg6: memref<8x1024xf32, #tpu.memory_space<vmem>>) attributes {dimension_semantics = [#tpu.dimension_semantics<arbitrary>], iteration_bounds = array<i64: 1>, scalar_prefetch = 0 : i64, scratch_operands = 0 : i64, tpu.core_type = #tpu.core_type<tc>, window_params = [{transform_indices = @transform_0, window_bounds = array<i64: 216, 1024>}, {pipeline_mode = #tpu.pipeline_mode<synchronous>, transform_indices = @transform_1, window_bounds = array<i64: 8, 216>}, {pipeline_mode = #tpu.pipeline_mode<synchronous>, transform_indices = @transform_2, window_bounds = array<i64: 8, 1>}, {pipeline_mode = #tpu.pipeline_mode<synchronous>, transform_indices = @transform_3, window_bounds = array<i64: 8, 1>}, {pipeline_mode = #tpu.pipeline_mode<synchronous>, transform_indices = @transform_4, window_bounds = array<i64: 8, 1024>}, {pipeline_mode = #tpu.pipeline_mode<synchronous>, transform_indices = @transform_5, window_bounds = array<i64: 8, 1024>}]} {
    %c0 = arith.constant 0 : index
    %c0_0 = arith.constant 0 : index
    %0 = vector.load %arg2[%c0, %c0_0] : memref<8x216xf32, #tpu.memory_space<vmem>>, vector<8x216xf32>
    %c0_1 = arith.constant 0 : index
    %c0_2 = arith.constant 0 : index
    %1 = vector.load %arg1[%c0_1, %c0_2] : memref<216x1024xf32, #tpu.memory_space<vmem>>, vector<216x1024xf32>
    %cst = arith.constant dense<0.000000e+00> : vector<8x1024xf32>
    %2 = tpu.matmul %0, %1, %cst {dimension_numbers = #tpu.dot_dimension_numbers<[1], [0], [0], [1], [0, 0, 1, 1], [], []>} : vector<8x216xf32>, vector<216x1024xf32>, vector<8x1024xf32> -> vector<8x1024xf32>
    %cst_3 = arith.constant dense<0.000000e+00> : vector<8xf32>
    %3 = vector.multi_reduction <add>, %2, %cst_3 [1] : vector<8x1024xf32> to vector<8xf32>
    %4 = vector.shape_cast %3 : vector<8xf32> to vector<8x1xf32>
    %cst_4 = arith.constant 9.765625E-4 : f32
    %5 = vector.broadcast %cst_4 : f32 to vector<8x1xf32>
    %6 = arith.mulf %4, %5 : vector<8x1xf32>
    %7 = vector.broadcast %6 : vector<8x1xf32> to vector<8x1024xf32>
    %8 = arith.subf %2, %7 : vector<8x1024xf32>
    %9 = arith.mulf %8, %8 : vector<8x1024xf32>
    %cst_5 = arith.constant dense<0.000000e+00> : vector<8xf32>
    %10 = vector.multi_reduction <add>, %9, %cst_5 [1] : vector<8x1024xf32> to vector<8xf32>
    %11 = vector.shape_cast %10 : vector<8xf32> to vector<8x1xf32>
    %cst_6 = arith.constant 9.765625E-4 : f32
    %12 = vector.broadcast %cst_6 : f32 to vector<8x1xf32>
    %13 = arith.mulf %11, %12 : vector<8x1xf32>
    %c0_7 = arith.constant 0 : index
    %c0_8 = arith.constant 0 : index
    %14 = vector.load %arg3[%c0_7, %c0_8] : memref<8x1xf32, #tpu.memory_space<vmem>>, vector<8x1xf32>
    %cst_9 = arith.constant 9.99999974E-6 : f32
    %15 = vector.broadcast %cst_9 : f32 to vector<8x1xf32>
    %16 = arith.addf %13, %15 : vector<8x1xf32>
    %17 = math.rsqrt %16 : vector<8x1xf32>
    %18 = arith.mulf %14, %17 : vector<8x1xf32>
    %c0_10 = arith.constant 0 : index
    %c0_11 = arith.constant 0 : index
    %19 = vector.load %arg4[%c0_10, %c0_11] : memref<8x1xf32, #tpu.memory_space<vmem>>, vector<8x1xf32>
    %20 = arith.mulf %6, %18 : vector<8x1xf32>
    %21 = arith.subf %19, %20 : vector<8x1xf32>
    %22 = vector.broadcast %18 : vector<8x1xf32> to vector<8x1024xf32>
    %23 = arith.mulf %2, %22 : vector<8x1024xf32>
    %24 = vector.broadcast %21 : vector<8x1xf32> to vector<8x1024xf32>
    %25 = arith.addf %23, %24 : vector<8x1024xf32>
    %c0_12 = arith.constant 0 : index
    %c0_13 = arith.constant 0 : index
    %26 = vector.load %arg5[%c0_12, %c0_13] : memref<8x1024xf32, #tpu.memory_space<vmem>>, vector<8x1024xf32>
    %27 = arith.addf %25, %26 : vector<8x1024xf32>
    %cst_14 = arith.constant 0.000000e+00 : f32
    %28 = vector.broadcast %cst_14 : f32 to vector<8x1024xf32>
    %29 = arith.maximumf %27, %28 : vector<8x1024xf32>
    %c0_15 = arith.constant 0 : index
    %c0_16 = arith.constant 0 : index
    %30 = vector.load %arg6[%c0_15, %c0_16] : memref<8x1024xf32, #tpu.memory_space<vmem>>, vector<8x1024xf32>
    tpu.vector_store %arg6[%c0_15, %c0_16], %29 {strides = array<i32>} : memref<8x1024xf32, #tpu.memory_space<vmem>>, vector<8x1024xf32>,
    return
  }
  func.func @transform_0(%arg0: i32) -> (i32, i32) {
    %c0_i32 = arith.constant 0 : i32
    %c0_i32_0 = arith.constant 0 : i32
    return %c0_i32, %arg0 : i32, i32
  }
  func.func @transform_1(%arg0: i32) -> (i32, i32) {
    %c0_i32 = arith.constant 0 : i32
    %c0_i32_0 = arith.constant 0 : i32
    %c0_i32_1 = arith.constant 0 : i32
    return %c0_i32, %c0_i32_0 : i32, i32
  }
  func.func @transform_2(%arg0: i32) -> (i32, i32) {
    %c0_i32 = arith.constant 0 : i32
    %c0_i32_0 = arith.constant 0 : i32
    %c0_i32_1 = arith.constant 0 : i32
    return %c0_i32, %c0_i32_0 : i32, i32
  }
  func.func @transform_3(%arg0: i32) -> (i32, i32) {
    %c0_i32 = arith.constant 0 : i32
    %c0_i32_0 = arith.constant 0 : i32
    %c0_i32_1 = arith.constant 0 : i32
    return %c0_i32, %c0_i32_0 : i32, i32
  }
  func.func @transform_4(%arg0: i32) -> (i32, i32) {
    %c0_i32 = arith.constant 0 : i32
    %c0_i32_0 = arith.constant 0 : i32
    %c0_i32_1 = arith.constant 0 : i32
    return %c0_i32, %c0_i32_0 : i32, i32
  }
  func.func @transform_5(%arg0: i32) -> (i32, i32) {
    %c0_i32 = arith.constant 0 : i32
    %c0_i32_0 = arith.constant 0 : i32
    %c0_i32_1 = arith.constant 0 : i32
    return %c0_i32, %c0_i32_0 : i32, i32
  }
}

module attributes {stable_mosaic.version = 11 : i64} {
  func.func @_fused_conv_bn_act_kernel(%arg0: i32, %arg1: memref<216x1024xf32, #tpu.memory_space<vmem>>, %arg2: memref<8x216xf32, #tpu.memory_space<vmem>>, %arg3: memref<8x1xf32, #tpu.memory_space<vmem>>, %arg4: memref<8x1xf32, #tpu.memory_space<vmem>>, %arg5: memref<8x1024xf32, #tpu.memory_space<vmem>>) attributes {dimension_semantics = [#tpu.dimension_semantics<arbitrary>], iteration_bounds = array<i64: 1>, scalar_prefetch = 0 : i64, scratch_operands = 0 : i64, tpu.core_type = #tpu.core_type<tc>, window_params = [{transform_indices = @transform_0, window_bounds = array<i64: 216, 1024>}, {pipeline_mode = #tpu.pipeline_mode<synchronous>, transform_indices = @transform_1, window_bounds = array<i64: 8, 216>}, {pipeline_mode = #tpu.pipeline_mode<synchronous>, transform_indices = @transform_2, window_bounds = array<i64: 8, 1>}, {pipeline_mode = #tpu.pipeline_mode<synchronous>, transform_indices = @transform_3, window_bounds = array<i64: 8, 1>}, {pipeline_mode = #tpu.pipeline_mode<synchronous>, transform_indices = @transform_4, window_bounds = array<i64: 8, 1024>}]} {
    %c0 = arith.constant 0 : index
    %c0_0 = arith.constant 0 : index
    %0 = vector.load %arg2[%c0, %c0_0] : memref<8x216xf32, #tpu.memory_space<vmem>>, vector<8x216xf32>
    %c0_1 = arith.constant 0 : index
    %c0_2 = arith.constant 0 : index
    %1 = vector.load %arg1[%c0_1, %c0_2] : memref<216x1024xf32, #tpu.memory_space<vmem>>, vector<216x1024xf32>
    %cst = arith.constant dense<0.000000e+00> : vector<8x1024xf32>
    %2 = tpu.matmul %0, %1, %cst {dimension_numbers = #tpu.dot_dimension_numbers<[1], [0], [0], [1], [0, 0, 1, 1], [], []>} : vector<8x216xf32>, vector<216x1024xf32>, vector<8x1024xf32> -> vector<8x1024xf32>
    %cst_3 = arith.constant dense<0.000000e+00> : vector<8xf32>
    %3 = vector.multi_reduction <add>, %2, %cst_3 [1] : vector<8x1024xf32> to vector<8xf32>
    %4 = vector.shape_cast %3 : vector<8xf32> to vector<8x1xf32>
    %cst_4 = arith.constant 9.765625E-4 : f32
    %5 = vector.broadcast %cst_4 : f32 to vector<8x1xf32>
    %6 = arith.mulf %4, %5 : vector<8x1xf32>
    %7 = vector.broadcast %6 : vector<8x1xf32> to vector<8x1024xf32>
    %8 = arith.subf %2, %7 : vector<8x1024xf32>
    %9 = arith.mulf %8, %8 : vector<8x1024xf32>
    %cst_5 = arith.constant dense<0.000000e+00> : vector<8xf32>
    %10 = vector.multi_reduction <add>, %9, %cst_5 [1] : vector<8x1024xf32> to vector<8xf32>
    %11 = vector.shape_cast %10 : vector<8xf32> to vector<8x1xf32>
    %cst_6 = arith.constant 9.765625E-4 : f32
    %12 = vector.broadcast %cst_6 : f32 to vector<8x1xf32>
    %13 = arith.mulf %11, %12 : vector<8x1xf32>
    %c0_7 = arith.constant 0 : index
    %c0_8 = arith.constant 0 : index
    %14 = vector.load %arg3[%c0_7, %c0_8] : memref<8x1xf32, #tpu.memory_space<vmem>>, vector<8x1xf32>
    %cst_9 = arith.constant 9.99999974E-6 : f32
    %15 = vector.broadcast %cst_9 : f32 to vector<8x1xf32>
    %16 = arith.addf %13, %15 : vector<8x1xf32>
    %17 = math.rsqrt %16 : vector<8x1xf32>
    %18 = arith.mulf %14, %17 : vector<8x1xf32>
    %c0_10 = arith.constant 0 : index
    %c0_11 = arith.constant 0 : index
    %19 = vector.load %arg4[%c0_10, %c0_11] : memref<8x1xf32, #tpu.memory_space<vmem>>, vector<8x1xf32>
    %20 = arith.mulf %6, %18 : vector<8x1xf32>
    %21 = arith.subf %19, %20 : vector<8x1xf32>
    %22 = vector.broadcast %18 : vector<8x1xf32> to vector<8x1024xf32>
    %23 = arith.mulf %2, %22 : vector<8x1024xf32>
    %24 = vector.broadcast %21 : vector<8x1xf32> to vector<8x1024xf32>
    %25 = arith.addf %23, %24 : vector<8x1024xf32>
    %cst_12 = arith.constant 0.000000e+00 : f32
    %26 = vector.broadcast %cst_12 : f32 to vector<8x1024xf32>
    %27 = arith.maximumf %25, %26 : vector<8x1024xf32>
    %c0_13 = arith.constant 0 : index
    %c0_14 = arith.constant 0 : index
    %28 = vector.load %arg5[%c0_13, %c0_14] : memref<8x1024xf32, #tpu.memory_space<vmem>>, vector<8x1024xf32>
    tpu.vector_store %arg5[%c0_13, %c0_14], %27 {strides = array<i32>} : memref<8x1024xf32, #tpu.memory_space<vmem>>, vector<8x1024xf32>,
    return
  }
  func.func @transform_0(%arg0: i32) -> (i32, i32) {
    %c0_i32 = arith.constant 0 : i32
    %c0_i32_0 = arith.constant 0 : i32
    return %c0_i32, %arg0 : i32, i32
  }
  func.func @transform_1(%arg0: i32) -> (i32, i32) {
    %c0_i32 = arith.constant 0 : i32
    %c0_i32_0 = arith.constant 0 : i32
    %c0_i32_1 = arith.constant 0 : i32
    return %c0_i32, %c0_i32_0 : i32, i32
  }
  func.func @transform_2(%arg0: i32) -> (i32, i32) {
    %c0_i32 = arith.constant 0 : i32
    %c0_i32_0 = arith.constant 0 : i32
    %c0_i32_1 = arith.constant 0 : i32
    return %c0_i32, %c0_i32_0 : i32, i32
  }
  func.func @transform_3(%arg0: i32) -> (i32, i32) {
    %c0_i32 = arith.constant 0 : i32
    %c0_i32_0 = arith.constant 0 : i32
    %c0_i32_1 = arith.constant 0 : i32
    return %c0_i32, %c0_i32_0 : i32, i32
  }
  func.func @transform_4(%arg0: i32) -> (i32, i32) {
    %c0_i32 = arith.constant 0 : i32
    %c0_i32_0 = arith.constant 0 : i32
    %c0_i32_1 = arith.constant 0 : i32
    return %c0_i32, %c0_i32_0 : i32, i32
  }
}

</mosaic_0001>

<llo_original>
// kernel: _lambda_.5
$region0: #{_lambda_.5}
  #allocation0 [shape = 'u32[]', space=smem, size = 0x4, offset = 0x4, fixed_abs, tag = 'smem constant byte address 0x4 - core index']
  #allocation1 [shape = 'u32[72,128]{1,0:T(1,128)}', space=vmem, size = 0x9000, scoped, tag = 'internal scratch']
  %s0 = inlined_call_operand.vmem [shape: f32[8,1024], index: 0, kind: input, shape index: {}]
  %s1 = inlined_call_operand.vmem [shape: f32[8,8], index: 1, kind: input, shape index: {}]
  %s2 = inlined_call_operand.vmem [shape: f32[8,1], index: 2, kind: input, shape index: {}]
  %s3 = inlined_call_operand.vmem [shape: f32[8,1], index: 3, kind: input, shape index: {}]
  %s4 = inlined_call_operand.vmem [shape: f32[8,1024], index: 4, kind: output, shape index: {}]
  %s5 = sld [smem:[#allocation0]]
  $region26: #{_lambda_.5} parent=0
    _
  %s7 = ssub.s32 1, %s5
  %s8 = scalar_select 0, %s7, %s5
  // Predicated region
  $region2: #{_lambda_.5} parent=0 // pred_check
    _
  $region3: #{_lambda_.5} parent=0 // pred_check_branch
    %10 = sbr.rel (0) target = $region5
  $region4: #{_lambda_.5} parent=0 // pred_region
    _
  $region5: #{_lambda_.5} parent=0 // pred_fallthru
    _
  // Predicated region
  $region6: #{_lambda_.5} parent=0 // pred_check
    _
  $region7: #{_lambda_.5} parent=0 // pred_check_branch
    %12 = sbr.rel (0) target = $region9
  $region8: #{_lambda_.5} parent=0 // pred_region
    _
  $region9: #{_lambda_.5} parent=0 // pred_fallthru
    _
  // Predicated region
  $region10: #{_lambda_.5} parent=0 // pred_check
    _
  $region11: #{_lambda_.5} parent=0 // pred_check_branch
    %14 = sbr.rel (0) target = $region13
  $region12: #{_lambda_.5} parent=0 // pred_region
    _
  $region13: #{_lambda_.5} parent=0 // pred_fallthru
    _
  // Predicated region
  $region14: #{_lambda_.5} parent=0 // pred_check
    _
  $region15: #{_lambda_.5} parent=0 // pred_check_branch
    %16 = sbr.rel (0) target = $region17
  $region16: #{_lambda_.5} parent=0 // pred_region
    _
  $region17: #{_lambda_.5} parent=0 // pred_fallthru
    _
  %v17 = vld [vmem:[%s1] sm:$0xff]
  %v18 = vld [vmem:[%s0] sm:$0xff]
  %v19 = vld [vmem:[%s0 + $0x8] sm:$0xff]
  %v20 = vld [vmem:[%s0 + $0x10] sm:$0xff]
  %v21 = vld [vmem:[%s0 + $0x18] sm:$0xff]
  %v22 = vld [vmem:[%s0 + $0x20] sm:$0xff]
  %v23 = vld [vmem:[%s0 + $0x28] sm:$0xff]
  %v24 = vld [vmem:[%s0 + $0x30] sm:$0xff]
  %v25 = vld [vmem:[%s0 + $0x38] sm:$0xff]
  %vm26 = vcmask 64512
  %v28 = vsel %vm26, %v17, 0
  %30 = vmatpush.msra.mxu0 0.0
  %31 = vmatpush.msra.mxu0 0.0
  %32 = vmatpush.msra.mxu0 0.0
  %33 = vmatpush.msra.mxu0 0.0
  %34 = vmatpush.msra.mxu0 0.0
  %35 = vmatpush.msra.mxu0 0.0
  %36 = vmatpush.msra.mxu0 0.0
  %37 = vmatpush.msra.mxu0 0.0
  %38 = vmatpush.msra.mxu0 0.0
  %39 = vmatpush.msra.mxu0 0.0
  %40 = vmatpush.msra.mxu0 0.0
  %41 = vmatpush.msra.mxu0 0.0
  %42 = vmatpush.msra.mxu0 0.0
  %43 = vmatpush.msra.mxu0 0.0
  %44 = vmatpush.msra.mxu0 0.0
  %45 = vmatpush.msra.mxu0 %v18
  %46 = vmatmul.f32.gmra.mxu0 %v28
  %v47 = vpop.f32.mrf.mxu0
  %v48 = vadd.f32 0.0, %v47
  %49 = vdwg.mxu0
  %50 = vmatpush.msra.mxu0 0.0
  %51 = vmatpush.msra.mxu0 0.0
  %52 = vmatpush.msra.mxu0 0.0
  %53 = vmatpush.msra.mxu0 0.0
  %54 = vmatpush.msra.mxu0 0.0
  %55 = vmatpush.msra.mxu0 0.0
  %56 = vmatpush.msra.mxu0 0.0
  %57 = vmatpush.msra.mxu0 0.0
  %58 = vmatpush.msra.mxu0 0.0
  %59 = vmatpush.msra.mxu0 0.0
  %60 = vmatpush.msra.mxu0 0.0
  %61 = vmatpush.msra.mxu0 0.0
  %62 = vmatpush.msra.mxu0 0.0
  %63 = vmatpush.msra.mxu0 0.0
  %64 = vmatpush.msra.mxu0 0.0
  %65 = vmatpush.msra.mxu0 %v19
  %66 = vmatmul.f32.gmra.mxu0 %v28
  %v67 = vpop.f32.mrf.mxu0
  %v68 = vadd.f32 0.0, %v67
  %69 = vdwg.mxu0
  %70 = vmatpush.msra.mxu0 0.0
  %71 = vmatpush.msra.mxu0 0.0
  %72 = vmatpush.msra.mxu0 0.0
  %73 = vmatpush.msra.mxu0 0.0
  %74 = vmatpush.msra.mxu0 0.0
  %75 = vmatpush.msra.mxu0 0.0
  %76 = vmatpush.msra.mxu0 0.0
  %77 = vmatpush.msra.mxu0 0.0
  %78 = vmatpush.msra.mxu0 0.0
  %79 = vmatpush.msra.mxu0 0.0
  %80 = vmatpush.msra.mxu0 0.0
  %81 = vmatpush.msra.mxu0 0.0
  %82 = vmatpush.msra.mxu0 0.0
  %83 = vmatpush.msra.mxu0 0.0
  %84 = vmatpush.msra.mxu0 0.0
  %85 = vmatpush.msra.mxu0 %v20
  %86 = vmatmul.f32.gmra.mxu0 %v28
  %v87 = vpop.f32.mrf.mxu0
  %v88 = vadd.f32 0.0, %v87
  %89 = vdwg.mxu0
  %90 = vmatpush.msra.mxu0 0.0
  %91 = vmatpush.msra.mxu0 0.0
  %92 = vmatpush.msra.mxu0 0.0
  %93 = vmatpush.msra.mxu0 0.0
  %94 = vmatpush.msra.mxu0 0.0
  %95 = vmatpush.msra.mxu0 0.0
  %96 = vmatpush.msra.mxu0 0.0
  %97 = vmatpush.msra.mxu0 0.0
  %98 = vmatpush.msra.mxu0 0.0
  %99 = vmatpush.msra.mxu0 0.0
  %100 = vmatpush.msra.mxu0 0.0
  %101 = vmatpush.msra.mxu0 0.0
  %102 = vmatpush.msra.mxu0 0.0
  %103 = vmatpush.msra.mxu0 0.0
  %104 = vmatpush.msra.mxu0 0.0
  %105 = vmatpush.msra.mxu0 %v21
  %106 = vmatmul.f32.gmra.mxu0 %v28
  %v107 = vpop.f32.mrf.mxu0
  %v108 = vadd.f32 0.0, %v107
  %109 = vdwg.mxu0
  %110 = vmatpush.msra.mxu0 0.0
  %111 = vmatpush.msra.mxu0 0.0
  %112 = vmatpush.msra.mxu0 0.0
  %113 = vmatpush.msra.mxu0 0.0
  %114 = vmatpush.msra.mxu0 0.0
  %115 = vmatpush.msra.mxu0 0.0
  %116 = vmatpush.msra.mxu0 0.0
  %117 = vmatpush.msra.mxu0 0.0
  %118 = vmatpush.msra.mxu0 0.0
  %119 = vmatpush.msra.mxu0 0.0
  %120 = vmatpush.msra.mxu0 0.0
  %121 = vmatpush.msra.mxu0 0.0
  %122 = vmatpush.msra.mxu0 0.0
  %123 = vmatpush.msra.mxu0 0.0
  %124 = vmatpush.msra.mxu0 0.0
  %125 = vmatpush.msra.mxu0 %v22
  %126 = vmatmul.f32.gmra.mxu0 %v28
  %v127 = vpop.f32.mrf.mxu0
  %v128 = vadd.f32 0.0, %v127
  %129 = vdwg.mxu0
  %130 = vmatpush.msra.mxu0 0.0
  %131 = vmatpush.msra.mxu0 0.0
  %132 = vmatpush.msra.mxu0 0.0
  %133 = vmatpush.msra.mxu0 0.0
  %134 = vmatpush.msra.mxu0 0.0
  %135 = vmatpush.msra.mxu0 0.0
  %136 = vmatpush.msra.mxu0 0.0
  %137 = vmatpush.msra.mxu0 0.0
  %138 = vmatpush.msra.mxu0 0.0
  %139 = vmatpush.msra.mxu0 0.0
  %140 = vmatpush.msra.mxu0 0.0
  %141 = vmatpush.msra.mxu0 0.0
  %142 = vmatpush.msra.mxu0 0.0
  %143 = vmatpush.msra.mxu0 0.0
  %144 = vmatpush.msra.mxu0 0.0
  %145 = vmatpush.msra.mxu0 %v23
  %146 = vmatmul.f32.gmra.mxu0 %v28
  %v147 = vpop.f32.mrf.mxu0
  %v148 = vadd.f32 0.0, %v147
  %149 = vdwg.mxu0
  %150 = vmatpush.msra.mxu0 0.0
  %151 = vmatpush.msra.mxu0 0.0
  %152 = vmatpush.msra.mxu0 0.0
  %153 = vmatpush.msra.mxu0 0.0
  %154 = vmatpush.msra.mxu0 0.0
  %155 = vmatpush.msra.mxu0 0.0
  %156 = vmatpush.msra.mxu0 0.0
  %157 = vmatpush.msra.mxu0 0.0
  %158 = vmatpush.msra.mxu0 0.0
  %159 = vmatpush.msra.mxu0 0.0
  %160 = vmatpush.msra.mxu0 0.0
  %161 = vmatpush.msra.mxu0 0.0
  %162 = vmatpush.msra.mxu0 0.0
  %163 = vmatpush.msra.mxu0 0.0
  %164 = vmatpush.msra.mxu0 0.0
  %165 = vmatpush.msra.mxu0 %v24
  %166 = vmatmul.f32.gmra.mxu0 %v28
  %v167 = vpop.f32.mrf.mxu0
  %v168 = vadd.f32 0.0, %v167
  %169 = vdwg.mxu0
  %170 = vmatpush.msra.mxu0 0.0
  %171 = vmatpush.msra.mxu0 0.0
  %172 = vmatpush.msra.mxu0 0.0
  %173 = vmatpush.msra.mxu0 0.0
  %174 = vmatpush.msra.mxu0 0.0
  %175 = vmatpush.msra.mxu0 0.0
  %176 = vmatpush.msra.mxu0 0.0
  %177 = vmatpush.msra.mxu0 0.0
  %178 = vmatpush.msra.mxu0 0.0
  %179 = vmatpush.msra.mxu0 0.0
  %180 = vmatpush.msra.mxu0 0.0
  %181 = vmatpush.msra.mxu0 0.0
  %182 = vmatpush.msra.mxu0 0.0
  %183 = vmatpush.msra.mxu0 0.0
  %184 = vmatpush.msra.mxu0 0.0
  %185 = vmatpush.msra.mxu0 %v25
  %186 = vmatmul.f32.gmra.mxu0 %v28
  %v187 = vpop.f32.mrf.mxu0
  %v188 = vadd.f32 0.0, %v187
  %189 = vdwg.mxu0
  %v190 = vadd.f32 %v48, %v68
  %v191 = vadd.f32 %v190, %v88
  %v192 = vadd.f32 %v191, %v108
  %v193 = vadd.f32 %v192, %v128
  %v194 = vadd.f32 %v193, %v148
  %v195 = vadd.f32 %v194, %v168
  %v196 = vadd.f32 %v195, %v188
  %197 = vadd.xlane.f32.xlu0 %v196
  %v198 = vpop.xlane.xlu0 %197
  %v199 = vmul.f32 %v198, 0.0009765625
  %v200 = vsub.f32 %v48, %v199
  %v201 = vsub.f32 %v68, %v199
  %v202 = vsub.f32 %v88, %v199
  %v203 = vsub.f32 %v108, %v199
  %v204 = vsub.f32 %v128, %v199
  %v205 = vsub.f32 %v148, %v199
  %v206 = vsub.f32 %v168, %v199
  %v207 = vsub.f32 %v188, %v199
  %v208 = vmul.f32 %v200, %v200
  %v209 = vmul.f32 %v201, %v201
  %v210 = vmul.f32 %v202, %v202
  %v211 = vmul.f32 %v203, %v203
  %v212 = vmul.f32 %v204, %v204
  %v213 = vmul.f32 %v205, %v205
  %v214 = vmul.f32 %v206, %v206
  %v215 = vmul.f32 %v207, %v207
  %v216 = vadd.f32 %v208, %v209
  %v217 = vadd.f32 %v216, %v210
  %v218 = vadd.f32 %v217, %v211
  %v219 = vadd.f32 %v218, %v212
  %v220 = vadd.f32 %v219, %v213
  %v221 = vadd.f32 %v220, %v214
  %v222 = vadd.f32 %v221, %v215
  %223 = vadd.xlane.f32.xlu0 %v222
  %v224 = vpop.xlane.xlu0 %223
  %v225 = vmul.f32 %v224, 0.0009765625
  %v226 = vld [vmem:[%s2] sm:$0xff]
  %v227 = vadd.f32 %v225, 1e-05
  %v228 = vrsqrt.pop %v227
  %v229 = vmul.f32 %v228, %v227
  %v230 = vmul.f32 %v229, %v228
  %v231 = vmul.f32 0.5, %v230
  %v232 = vsub.f32 1.5, %v231
  %v233 = vmul.f32 %v228, %v232
  %vm234 = vweird.f32 %v227
  %vm235 = vweird.f32 %v228
  %vm236 = vmor %vm234, %vm235
  %v237 = vsel %vm236, %v228, %v233
  %v238 = vmul.f32 %v226, %v237
  %v239 = vld [vmem:[%s3] sm:$0xff]
  %v240 = vmul.f32 %v199, %v238
  %v241 = vsub.f32 %v239, %v240
  %243 = vset.pattern.permute.xlu0 0
  %244 = vperm.xlu0 %243, %v238
  %v245 = vpop.permute.xlu0 %244
  %v247 = vmul.f32 %v48, %v245
  %v248 = vmul.f32 %v68, %v245
  %v249 = vmul.f32 %v88, %v245
  %v250 = vmul.f32 %v108, %v245
  %v251 = vmul.f32 %v128, %v245
  %v252 = vmul.f32 %v148, %v245
  %v253 = vmul.f32 %v168, %v245
  %v254 = vmul.f32 %v188, %v245
  %256 = vset.pattern.permute.xlu0 0
  %257 = vperm.xlu0 %256, %v241
  %v258 = vpop.permute.xlu0 %257
  %v260 = vadd.f32 %v247, %v258
  %v261 = vadd.f32 %v248, %v258
  %v262 = vadd.f32 %v249, %v258
  %v263 = vadd.f32 %v250, %v258
  %v264 = vadd.f32 %v251, %v258
  %v265 = vadd.f32 %v252, %v258
  %v266 = vadd.f32 %v253, %v258
  %v267 = vadd.f32 %v254, %v258
  %268 = vst [vmem:[%s4] sm:$0xff] %v260
  %269 = vst [vmem:[%s4 + $0x8] sm:$0xff] %v261
  %270 = vst [vmem:[%s4 + $0x10] sm:$0xff] %v262
  %271 = vst [vmem:[%s4 + $0x18] sm:$0xff] %v263
  %272 = vst [vmem:[%s4 + $0x20] sm:$0xff] %v264
  %273 = vst [vmem:[%s4 + $0x28] sm:$0xff] %v265
  %274 = vst [vmem:[%s4 + $0x30] sm:$0xff] %v266
  %275 = vst [vmem:[%s4 + $0x38] sm:$0xff] %v267
  // Predicated region
  $region18: #{_lambda_.5} parent=0 // pred_check
    _
  $region19: #{_lambda_.5} parent=0 // pred_check_branch
    %277 = sbr.rel (0) target = $region21
  $region20: #{_lambda_.5} parent=0 // pred_region
    _
  $region21: #{_lambda_.5} parent=0 // pred_fallthru
    _
  // Predicated region
  $region22: #{_lambda_.5} parent=0 // pred_check
    _
  $region23: #{_lambda_.5} parent=0 // pred_check_branch
    %279 = sbr.rel (0) target = $region25
  $region24: #{_lambda_.5} parent=0 // pred_region
    _
  $region25: #{_lambda_.5} parent=0 // pred_fallthru
    _

// kernel: _lambda_.6
$region0: #{_lambda_.6}
  #allocation0 [shape = 'u32[]', space=smem, size = 0x4, offset = 0x4, fixed_abs, tag = 'smem constant byte address 0x4 - core index']
  #allocation1 [shape = 'u32[72,128]{1,0:T(1,128)}', space=vmem, size = 0x9000, scoped, tag = 'internal scratch']
  %s0 = inlined_call_operand.vmem [shape: f32[112,1024], index: 0, kind: input, shape index: {}]
  %s1 = inlined_call_operand.vmem [shape: f32[8,112], index: 1, kind: input, shape index: {}]
  %s2 = inlined_call_operand.vmem [shape: f32[8,1], index: 2, kind: input, shape index: {}]
  %s3 = inlined_call_operand.vmem [shape: f32[8,1], index: 3, kind: input, shape index: {}]
  %s4 = inlined_call_operand.vmem [shape: f32[8,1024], index: 4, kind: output, shape index: {}]
  %s5 = sld [smem:[#allocation0]]
  $region26: #{_lambda_.6} parent=0
    _
  %s7 = ssub.s32 1, %s5
  %s8 = scalar_select 0, %s7, %s5
  // Predicated region
  $region2: #{_lambda_.6} parent=0 // pred_check
    _
  $region3: #{_lambda_.6} parent=0 // pred_check_branch
    %10 = sbr.rel (0) target = $region5
  $region4: #{_lambda_.6} parent=0 // pred_region
    _
  $region5: #{_lambda_.6} parent=0 // pred_fallthru
    _
  // Predicated region
  $region6: #{_lambda_.6} parent=0 // pred_check
    _
  $region7: #{_lambda_.6} parent=0 // pred_check_branch
    %12 = sbr.rel (0) target = $region9
  $region8: #{_lambda_.6} parent=0 // pred_region
    _
  $region9: #{_lambda_.6} parent=0 // pred_fallthru
    _
  // Predicated region
  $region10: #{_lambda_.6} parent=0 // pred_check
    _
  $region11: #{_lambda_.6} parent=0 // pred_check_branch
    %14 = sbr.rel (0) target = $region13
  $region12: #{_lambda_.6} parent=0 // pred_region
    _
  $region13: #{_lambda_.6} parent=0 // pred_fallthru
    _
  // Predicated region
  $region14: #{_lambda_.6} parent=0 // pred_check
    _
  $region15: #{_lambda_.6} parent=0 // pred_check_branch
    %16 = sbr.rel (0) target = $region17
  $region16: #{_lambda_.6} parent=0 // pred_region
    _
  $region17: #{_lambda_.6} parent=0 // pred_fallthru
    _
  %v17 = vld [vmem:[%s1] sm:$0xff]
  %v18 = vld [vmem:[%s0] sm:$0xff]
  %v19 = vld [vmem:[%s0 + $0x8] sm:$0xff]
  %v20 = vld [vmem:[%s0 + $0x10] sm:$0xff]
  %v21 = vld [vmem:[%s0 + $0x18] sm:$0xff]
  %v22 = vld [vmem:[%s0 + $0x20] sm:$0xff]
  %v23 = vld [vmem:[%s0 + $0x28] sm:$0xff]
  %v24 = vld [vmem:[%s0 + $0x30] sm:$0xff]
  %v25 = vld [vmem:[%s0 + $0x38] sm:$0xff]
  %v26 = vld [vmem:[%s0 + $0x40] sm:$0xff]
  %v27 = vld [vmem:[%s0 + $0x48] sm:$0xff]
  %v28 = vld [vmem:[%s0 + $0x50] sm:$0xff]
  %v29 = vld [vmem:[%s0 + $0x58] sm:$0xff]
  %v30 = vld [vmem:[%s0 + $0x60] sm:$0xff]
  %v31 = vld [vmem:[%s0 + $0x68] sm:$0xff]
  %v32 = vld [vmem:[%s0 + $0x70] sm:$0xff]
  %v33 = vld [vmem:[%s0 + $0x78] sm:$0xff]
  %v34 = vld [vmem:[%s0 + $0x80] sm:$0xff]
  %v35 = vld [vmem:[%s0 + $0x88] sm:$0xff]
  %v36 = vld [vmem:[%s0 + $0x90] sm:$0xff]
  %v37 = vld [vmem:[%s0 + $0x98] sm:$0xff]
  %v38 = vld [vmem:[%s0 + $0xa0] sm:$0xff]
  %v39 = vld [vmem:[%s0 + $0xa8] sm:$0xff]
  %v40 = vld [vmem:[%s0 + $0xb0] sm:$0xff]
  %v41 = vld [vmem:[%s0 + $0xb8] sm:$0xff]
  %v42 = vld [vmem:[%s0 + $0xc0] sm:$0xff]
  %v43 = vld [vmem:[%s0 + $0xc8] sm:$0xff]
  %v44 = vld [vmem:[%s0 + $0xd0] sm:$0xff]
  %v45 = vld [vmem:[%s0 + $0xd8] sm:$0xff]
  %v46 = vld [vmem:[%s0 + $0xe0] sm:$0xff]
  %v47 = vld [vmem:[%s0 + $0xe8] sm:$0xff]
  %v48 = vld [vmem:[%s0 + $0xf0] sm:$0xff]
  %v49 = vld [vmem:[%s0 + $0xf8] sm:$0xff]
  %v50 = vld [vmem:[%s0 + $0x100] sm:$0xff]
  %v51 = vld [vmem:[%s0 + $0x108] sm:$0xff]
  %v52 = vld [vmem:[%s0 + $0x110] sm:$0xff]
  %v53 = vld [vmem:[%s0 + $0x118] sm:$0xff]
  %v54 = vld [vmem:[%s0 + $0x120] sm:$0xff]
  %v55 = vld [vmem:[%s0 + $0x128] sm:$0xff]
  %v56 = vld [vmem:[%s0 + $0x130] sm:$0xff]
  %v57 = vld [vmem:[%s0 + $0x138] sm:$0xff]
  %v58 = vld [vmem:[%s0 + $0x140] sm:$0xff]
  %v59 = vld [vmem:[%s0 + $0x148] sm:$0xff]
  %v60 = vld [vmem:[%s0 + $0x150] sm:$0xff]
  %v61 = vld [vmem:[%s0 + $0x158] sm:$0xff]
  %v62 = vld [vmem:[%s0 + $0x160] sm:$0xff]
  %v63 = vld [vmem:[%s0 + $0x168] sm:$0xff]
  %v64 = vld [vmem:[%s0 + $0x170] sm:$0xff]
  %v65 = vld [vmem:[%s0 + $0x178] sm:$0xff]
  %v66 = vld [vmem:[%s0 + $0x180] sm:$0xff]
  %v67 = vld [vmem:[%s0 + $0x188] sm:$0xff]
  %v68 = vld [vmem:[%s0 + $0x190] sm:$0xff]
  %v69 = vld [vmem:[%s0 + $0x198] sm:$0xff]
  %v70 = vld [vmem:[%s0 + $0x1a0] sm:$0xff]
  %v71 = vld [vmem:[%s0 + $0x1a8] sm:$0xff]
  %v72 = vld [vmem:[%s0 + $0x1b0] sm:$0xff]
  %v73 = vld [vmem:[%s0 + $0x1b8] sm:$0xff]
  %v74 = vld [vmem:[%s0 + $0x1c0] sm:$0xff]
  %v75 = vld [vmem:[%s0 + $0x1c8] sm:$0xff]
  %v76 = vld [vmem:[%s0 + $0x1d0] sm:$0xff]
  %v77 = vld [vmem:[%s0 + $0x1d8] sm:$0xff]
  %v78 = vld [vmem:[%s0 + $0x1e0] sm:$0xff]
  %v79 = vld [vmem:[%s0 + $0x1e8] sm:$0xff]
  %v80 = vld [vmem:[%s0 + $0x1f0] sm:$0xff]
  %v81 = vld [vmem:[%s0 + $0x1f8] sm:$0xff]
  %v82 = vld [vmem:[%s0 + $0x200] sm:$0xff]
  %v83 = vld [vmem:[%s0 + $0x208] sm:$0xff]
  %v84 = vld [vmem:[%s0 + $0x210] sm:$0xff]
  %v85 = vld [vmem:[%s0 + $0x218] sm:$0xff]
  %v86 = vld [vmem:[%s0 + $0x220] sm:$0xff]
  %v87 = vld [vmem:[%s0 + $0x228] sm:$0xff]
  %v88 = vld [vmem:[%s0 + $0x230] sm:$0xff]
  %v89 = vld [vmem:[%s0 + $0x238] sm:$0xff]
  %v90 = vld [vmem:[%s0 + $0x240] sm:$0xff]
  %v91 = vld [vmem:[%s0 + $0x248] sm:$0xff]
  %v92 = vld [vmem:[%s0 + $0x250] sm:$0xff]
  %v93 = vld [vmem:[%s0 + $0x258] sm:$0xff]
  %v94 = vld [vmem:[%s0 + $0x260] sm:$0xff]
  %v95 = vld [vmem:[%s0 + $0x268] sm:$0xff]
  %v96 = vld [vmem:[%s0 + $0x270] sm:$0xff]
  %v97 = vld [vmem:[%s0 + $0x278] sm:$0xff]
  %v98 = vld [vmem:[%s0 + $0x280] sm:$0xff]
  %v99 = vld [vmem:[%s0 + $0x288] sm:$0xff]
  %v100 = vld [vmem:[%s0 + $0x290] sm:$0xff]
  %v101 = vld [vmem:[%s0 + $0x298] sm:$0xff]
  %v102 = vld [vmem:[%s0 + $0x2a0] sm:$0xff]
  %v103 = vld [vmem:[%s0 + $0x2a8] sm:$0xff]
  %v104 = vld [vmem:[%s0 + $0x2b0] sm:$0xff]
  %v105 = vld [vmem:[%s0 + $0x2b8] sm:$0xff]
  %v106 = vld [vmem:[%s0 + $0x2c0] sm:$0xff]
  %v107 = vld [vmem:[%s0 + $0x2c8] sm:$0xff]
  %v108 = vld [vmem:[%s0 + $0x2d0] sm:$0xff]
  %v109 = vld [vmem:[%s0 + $0x2d8] sm:$0xff]
  %v110 = vld [vmem:[%s0 + $0x2e0] sm:$0xff]
  %v111 = vld [vmem:[%s0 + $0x2e8] sm:$0xff]
  %v112 = vld [vmem:[%s0 + $0x2f0] sm:$0xff]
  %v113 = vld [vmem:[%s0 + $0x2f8] sm:$0xff]
  %v114 = vld [vmem:[%s0 + $0x300] sm:$0xff]
  %v115 = vld [vmem:[%s0 + $0x308] sm:$0xff]
  %v116 = vld [vmem:[%s0 + $0x310] sm:$0xff]
  %v117 = vld [vmem:[%s0 + $0x318] sm:$0xff]
  %v118 = vld [vmem:[%s0 + $0x320] sm:$0xff]
  %v119 = vld [vmem:[%s0 + $0x328] sm:$0xff]
  %v120 = vld [vmem:[%s0 + $0x330] sm:$0xff]
  %v121 = vld [vmem:[%s0 + $0x338] sm:$0xff]
  %v122 = vld [vmem:[%s0 + $0x340] sm:$0xff]
  %v123 = vld [vmem:[%s0 + $0x348] sm:$0xff]
  %v124 = vld [vmem:[%s0 + $0x350] sm:$0xff]
  %v125 = vld [vmem:[%s0 + $0x358] sm:$0xff]
  %v126 = vld [vmem:[%s0 + $0x360] sm:$0xff]
  %v127 = vld [vmem:[%s0 + $0x368] sm:$0xff]
  %v128 = vld [vmem:[%s0 + $0x370] sm:$0xff]
  %v129 = vld [vmem:[%s0 + $0x378] sm:$0xff]
  %vm130 = vcmask 916480
  %v132 = vsel %vm130, %v17, 0
  %134 = vmatpush.msra.mxu0 0.0
  %135 = vmatpush.msra.mxu0 0.0
  %136 = vmatpush.msra.mxu0 %v122
  %137 = vmatpush.msra.mxu0 %v114
  %138 = vmatpush.msra.mxu0 %v106
  %139 = vmatpush.msra.mxu0 %v98
  %140 = vmatpush.msra.mxu0 %v90
  %141 = vmatpush.msra.mxu0 %v82
  %142 = vmatpush.msra.mxu0 %v74
  %143 = vmatpush.msra.mxu0 %v66
  %144 = vmatpush.msra.mxu0 %v58
  %145 = vmatpush.msra.mxu0 %v50
  %146 = vmatpush.msra.mxu0 %v42
  %147 = vmatpush.msra.mxu0 %v34
  %148 = vmatpush.msra.mxu0 %v26
  %149 = vmatpush.msra.mxu0 %v18
  %150 = vmatmul.f32.gmra.mxu0 %v132
  %v151 = vpop.f32.mrf.mxu0
  %v152 = vadd.f32 0.0, %v151
  %153 = vdwg.mxu0
  %154 = vmatpush.msra.mxu0 0.0
  %155 = vmatpush.msra.mxu0 0.0
  %156 = vmatpush.msra.mxu0 %v123
  %157 = vmatpush.msra.mxu0 %v115
  %158 = vmatpush.msra.mxu0 %v107
  %159 = vmatpush.msra.mxu0 %v99
  %160 = vmatpush.msra.mxu0 %v91
  %161 = vmatpush.msra.mxu0 %v83
  %162 = vmatpush.msra.mxu0 %v75
  %163 = vmatpush.msra.mxu0 %v67
  %164 = vmatpush.msra.mxu0 %v59
  %165 = vmatpush.msra.mxu0 %v51
  %166 = vmatpush.msra.mxu0 %v43
  %167 = vmatpush.msra.mxu0 %v35
  %168 = vmatpush.msra.mxu0 %v27
  %169 = vmatpush.msra.mxu0 %v19
  %170 = vmatmul.f32.gmra.mxu0 %v132
  %v171 = vpop.f32.mrf.mxu0
  %v172 = vadd.f32 0.0, %v171
  %173 = vdwg.mxu0
  %174 = vmatpush.msra.mxu0 0.0
  %175 = vmatpush.msra.mxu0 0.0
  %176 = vmatpush.msra.mxu0 %v124
  %177 = vmatpush.msra.mxu0 %v116
  %178 = vmatpush.msra.mxu0 %v108
  %179 = vmatpush.msra.mxu0 %v100
  %180 = vmatpush.msra.mxu0 %v92
  %181 = vmatpush.msra.mxu0 %v84
  %182 = vmatpush.msra.mxu0 %v76
  %183 = vmatpush.msra.mxu0 %v68
  %184 = vmatpush.msra.mxu0 %v60
  %185 = vmatpush.msra.mxu0 %v52
  %186 = vmatpush.msra.mxu0 %v44
  %187 = vmatpush.msra.mxu0 %v36
  %188 = vmatpush.msra.mxu0 %v28
  %189 = vmatpush.msra.mxu0 %v20
  %190 = vmatmul.f32.gmra.mxu0 %v132
  %v191 = vpop.f32.mrf.mxu0
  %v192 = vadd.f32 0.0, %v191
  %193 = vdwg.mxu0
  %194 = vmatpush.msra.mxu0 0.0
  %195 = vmatpush.msra.mxu0 0.0
  %196 = vmatpush.msra.mxu0 %v125
  %197 = vmatpush.msra.mxu0 %v117
  %198 = vmatpush.msra.mxu0 %v109
  %199 = vmatpush.msra.mxu0 %v101
  %200 = vmatpush.msra.mxu0 %v93
  %201 = vmatpush.msra.mxu0 %v85
  %202 = vmatpush.msra.mxu0 %v77
  %203 = vmatpush.msra.mxu0 %v69
  %204 = vmatpush.msra.mxu0 %v61
  %205 = vmatpush.msra.mxu0 %v53
  %206 = vmatpush.msra.mxu0 %v45
  %207 = vmatpush.msra.mxu0 %v37
  %208 = vmatpush.msra.mxu0 %v29
  %209 = vmatpush.msra.mxu0 %v21
  %210 = vmatmul.f32.gmra.mxu0 %v132
  %v211 = vpop.f32.mrf.mxu0
  %v212 = vadd.f32 0.0, %v211
  %213 = vdwg.mxu0
  %214 = vmatpush.msra.mxu0 0.0
  %215 = vmatpush.msra.mxu0 0.0
  %216 = vmatpush.msra.mxu0 %v126
  %217 = vmatpush.msra.mxu0 %v118
  %218 = vmatpush.msra.mxu0 %v110
  %219 = vmatpush.msra.mxu0 %v102
  %220 = vmatpush.msra.mxu0 %v94
  %221 = vmatpush.msra.mxu0 %v86
  %222 = vmatpush.msra.mxu0 %v78
  %223 = vmatpush.msra.mxu0 %v70
  %224 = vmatpush.msra.mxu0 %v62
  %225 = vmatpush.msra.mxu0 %v54
  %226 = vmatpush.msra.mxu0 %v46
  %227 = vmatpush.msra.mxu0 %v38
  %228 = vmatpush.msra.mxu0 %v30
  %229 = vmatpush.msra.mxu0 %v22
  %230 = vmatmul.f32.gmra.mxu0 %v132
  %v231 = vpop.f32.mrf.mxu0
  %v232 = vadd.f32 0.0, %v231
  %233 = vdwg.mxu0
  %234 = vmatpush.msra.mxu0 0.0
  %235 = vmatpush.msra.mxu0 0.0
  %236 = vmatpush.msra.mxu0 %v127
  %237 = vmatpush.msra.mxu0 %v119
  %238 = vmatpush.msra.mxu0 %v111
  %239 = vmatpush.msra.mxu0 %v103
  %240 = vmatpush.msra.mxu0 %v95
  %241 = vmatpush.msra.mxu0 %v87
  %242 = vmatpush.msra.mxu0 %v79
  %243 = vmatpush.msra.mxu0 %v71
  %244 = vmatpush.msra.mxu0 %v63
  %245 = vmatpush.msra.mxu0 %v55
  %246 = vmatpush.msra.mxu0 %v47
  %247 = vmatpush.msra.mxu0 %v39
  %248 = vmatpush.msra.mxu0 %v31
  %249 = vmatpush.msra.mxu0 %v23
  %250 = vmatmul.f32.gmra.mxu0 %v132
  %v251 = vpop.f32.mrf.mxu0
  %v252 = vadd.f32 0.0, %v251
  %253 = vdwg.mxu0
  %254 = vmatpush.msra.mxu0 0.0
  %255 = vmatpush.msra.mxu0 0.0
  %256 = vmatpush.msra.mxu0 %v128
  %257 = vmatpush.msra.mxu0 %v120
  %258 = vmatpush.msra.mxu0 %v112
  %259 = vmatpush.msra.mxu0 %v104
  %260 = vmatpush.msra.mxu0 %v96
  %261 = vmatpush.msra.mxu0 %v88
  %262 = vmatpush.msra.mxu0 %v80
  %263 = vmatpush.msra.mxu0 %v72
  %264 = vmatpush.msra.mxu0 %v64
  %265 = vmatpush.msra.mxu0 %v56
  %266 = vmatpush.msra.mxu0 %v48
  %267 = vmatpush.msra.mxu0 %v40
  %268 = vmatpush.msra.mxu0 %v32
  %269 = vmatpush.msra.mxu0 %v24
  %270 = vmatmul.f32.gmra.mxu0 %v132
  %v271 = vpop.f32.mrf.mxu0
  %v272 = vadd.f32 0.0, %v271
  %273 = vdwg.mxu0
  %274 = vmatpush.msra.mxu0 0.0
  %275 = vmatpush.msra.mxu0 0.0
  %276 = vmatpush.msra.mxu0 %v129
  %277 = vmatpush.msra.mxu0 %v121
  %278 = vmatpush.msra.mxu0 %v113
  %279 = vmatpush.msra.mxu0 %v105
  %280 = vmatpush.msra.mxu0 %v97
  %281 = vmatpush.msra.mxu0 %v89
  %282 = vmatpush.msra.mxu0 %v81
  %283 = vmatpush.msra.mxu0 %v73
  %284 = vmatpush.msra.mxu0 %v65
  %285 = vmatpush.msra.mxu0 %v57
  %286 = vmatpush.msra.mxu0 %v49
  %287 = vmatpush.msra.mxu0 %v41
  %288 = vmatpush.msra.mxu0 %v33
  %289 = vmatpush.msra.mxu0 %v25
  %290 = vmatmul.f32.gmra.mxu0 %v132
  %v291 = vpop.f32.mrf.mxu0
  %v292 = vadd.f32 0.0, %v291
  %293 = vdwg.mxu0
  %v294 = vadd.f32 %v152, %v172
  %v295 = vadd.f32 %v294, %v192
  %v296 = vadd.f32 %v295, %v212
  %v297 = vadd.f32 %v296, %v232
  %v298 = vadd.f32 %v297, %v252
  %v299 = vadd.f32 %v298, %v272
  %v300 = vadd.f32 %v299, %v292
  %301 = vadd.xlane.f32.xlu0 %v300
  %v302 = vpop.xlane.xlu0 %301
  %v303 = vmul.f32 %v302, 0.0009765625
  %v304 = vsub.f32 %v152, %v303
  %v305 = vsub.f32 %v172, %v303
  %v306 = vsub.f32 %v192, %v303
  %v307 = vsub.f32 %v212, %v303
  %v308 = vsub.f32 %v232, %v303
  %v309 = vsub.f32 %v252, %v303
  %v310 = vsub.f32 %v272, %v303
  %v311 = vsub.f32 %v292, %v303
  %v312 = vmul.f32 %v304, %v304
  %v313 = vmul.f32 %v305, %v305
  %v314 = vmul.f32 %v306, %v306
  %v315 = vmul.f32 %v307, %v307
  %v316 = vmul.f32 %v308, %v308
  %v317 = vmul.f32 %v309, %v309
  %v318 = vmul.f32 %v310, %v310
  %v319 = vmul.f32 %v311, %v311
  %v320 = vadd.f32 %v312, %v313
  %v321 = vadd.f32 %v320, %v314
  %v322 = vadd.f32 %v321, %v315
  %v323 = vadd.f32 %v322, %v316
  %v324 = vadd.f32 %v323, %v317
  %v325 = vadd.f32 %v324, %v318
  %v326 = vadd.f32 %v325, %v319
  %327 = vadd.xlane.f32.xlu0 %v326
  %v328 = vpop.xlane.xlu0 %327
  %v329 = vmul.f32 %v328, 0.0009765625
  %v330 = vld [vmem:[%s2] sm:$0xff]
  %v331 = vadd.f32 %v329, 1e-05
  %v332 = vrsqrt.pop %v331
  %v333 = vmul.f32 %v332, %v331
  %v334 = vmul.f32 %v333, %v332
  %v335 = vmul.f32 0.5, %v334
  %v336 = vsub.f32 1.5, %v335
  %v337 = vmul.f32 %v332, %v336
  %vm338 = vweird.f32 %v331
  %vm339 = vweird.f32 %v332
  %vm340 = vmor %vm338, %vm339
  %v341 = vsel %vm340, %v332, %v337
  %v342 = vmul.f32 %v330, %v341
  %v343 = vld [vmem:[%s3] sm:$0xff]
  %v344 = vmul.f32 %v303, %v342
  %v345 = vsub.f32 %v343, %v344
  %347 = vset.pattern.permute.xlu0 0
  %348 = vperm.xlu0 %347, %v342
  %v349 = vpop.permute.xlu0 %348
  %v351 = vmul.f32 %v152, %v349
  %v352 = vmul.f32 %v172, %v349
  %v353 = vmul.f32 %v192, %v349
  %v354 = vmul.f32 %v212, %v349
  %v355 = vmul.f32 %v232, %v349
  %v356 = vmul.f32 %v252, %v349
  %v357 = vmul.f32 %v272, %v349
  %v358 = vmul.f32 %v292, %v349
  %360 = vset.pattern.permute.xlu0 0
  %361 = vperm.xlu0 %360, %v345
  %v362 = vpop.permute.xlu0 %361
  %v364 = vadd.f32 %v351, %v362
  %v365 = vadd.f32 %v352, %v362
  %v366 = vadd.f32 %v353, %v362
  %v367 = vadd.f32 %v354, %v362
  %v368 = vadd.f32 %v355, %v362
  %v369 = vadd.f32 %v356, %v362
  %v370 = vadd.f32 %v357, %v362
  %v371 = vadd.f32 %v358, %v362
  %v372 = vmax.f32 %v364, 0.0
  %v373 = vmax.f32 %v365, 0.0
  %v374 = vmax.f32 %v366, 0.0
  %v375 = vmax.f32 %v367, 0.0
  %v376 = vmax.f32 %v368, 0.0
  %v377 = vmax.f32 %v369, 0.0
  %v378 = vmax.f32 %v370, 0.0
  %v379 = vmax.f32 %v371, 0.0
  %380 = vst [vmem:[%s4] sm:$0xff] %v372
  %381 = vst [vmem:[%s4 + $0x8] sm:$0xff] %v373
  %382 = vst [vmem:[%s4 + $0x10] sm:$0xff] %v374
  %383 = vst [vmem:[%s4 + $0x18] sm:$0xff] %v375
  %384 = vst [vmem:[%s4 + $0x20] sm:$0xff] %v376
  %385 = vst [vmem:[%s4 + $0x28] sm:$0xff] %v377
  %386 = vst [vmem:[%s4 + $0x30] sm:$0xff] %v378
  %387 = vst [vmem:[%s4 + $0x38] sm:$0xff] %v379
  // Predicated region
  $region18: #{_lambda_.6} parent=0 // pred_check
    _
  $region19: #{_lambda_.6} parent=0 // pred_check_branch
    %389 = sbr.rel (0) target = $region21
  $region20: #{_lambda_.6} parent=0 // pred_region
    _
  $region21: #{_lambda_.6} parent=0 // pred_fallthru
    _
  // Predicated region
  $region22: #{_lambda_.6} parent=0 // pred_check
    _
  $region23: #{_lambda_.6} parent=0 // pred_check_branch
    %391 = sbr.rel (0) target = $region25
  $region24: #{_lambda_.6} parent=0 // pred_region
    _
  $region25: #{_lambda_.6} parent=0 // pred_fallthru
    _

// kernel: _lambda_.7
$region0: #{_lambda_.7}
  #allocation0 [shape = 'u32[]', space=smem, size = 0x4, offset = 0x4, fixed_abs, tag = 'smem constant byte address 0x4 - core index']
  #allocation1 [shape = 'u32[72,128]{1,0:T(1,128)}', space=vmem, size = 0x9000, scoped, tag = 'internal scratch']
  %s0 = inlined_call_operand.vmem [shape: f32[216,1024], index: 0, kind: input, shape index: {}]
  %s1 = inlined_call_operand.vmem [shape: f32[8,216], index: 1, kind: input, shape index: {}]
  %s2 = inlined_call_operand.vmem [shape: f32[8,1], index: 2, kind: input, shape index: {}]
  %s3 = inlined_call_operand.vmem [shape: f32[8,1], index: 3, kind: input, shape index: {}]
  %s4 = inlined_call_operand.vmem [shape: f32[8,1024], index: 4, kind: input, shape index: {}]
  %s5 = inlined_call_operand.vmem [shape: f32[8,1024], index: 5, kind: output, shape index: {}]
  %s6 = sld [smem:[#allocation0]]
  $region30: #{_lambda_.7} parent=0
    _
  %s8 = ssub.s32 1, %s6
  %s9 = scalar_select 0, %s8, %s6
  // Predicated region
  $region2: #{_lambda_.7} parent=0 // pred_check
    _
  $region3: #{_lambda_.7} parent=0 // pred_check_branch
    %11 = sbr.rel (0) target = $region5
  $region4: #{_lambda_.7} parent=0 // pred_region
    _
  $region5: #{_lambda_.7} parent=0 // pred_fallthru
    _
  // Predicated region
  $region6: #{_lambda_.7} parent=0 // pred_check
    _
  $region7: #{_lambda_.7} parent=0 // pred_check_branch
    %13 = sbr.rel (0) target = $region9
  $region8: #{_lambda_.7} parent=0 // pred_region
    _
  $region9: #{_lambda_.7} parent=0 // pred_fallthru
    _
  // Predicated region
  $region10: #{_lambda_.7} parent=0 // pred_check
    _
  $region11: #{_lambda_.7} parent=0 // pred_check_branch
    %15 = sbr.rel (0) target = $region13
  $region12: #{_lambda_.7} parent=0 // pred_region
    _
  $region13: #{_lambda_.7} parent=0 // pred_fallthru
    _
  // Predicated region
  $region14: #{_lambda_.7} parent=0 // pred_check
    _
  $region15: #{_lambda_.7} parent=0 // pred_check_branch
    %17 = sbr.rel (0) target = $region17
  $region16: #{_lambda_.7} parent=0 // pred_region
    _
  $region17: #{_lambda_.7} parent=0 // pred_fallthru
    _
  // Predicated region
  $region18: #{_lambda_.7} parent=0 // pred_check
    _
  $region19: #{_lambda_.7} parent=0 // pred_check_branch
    %19 = sbr.rel (0) target = $region21
  $region20: #{_lambda_.7} parent=0 // pred_region
    _
  $region21: #{_lambda_.7} parent=0 // pred_fallthru
    _
  %v20 = vld [vmem:[%s1] sm:$0xff]
  %v21 = vld [vmem:[%s1 + $0x8] sm:$0xff]
  %v22 = vld [vmem:[%s0] sm:$0xff]
  %v23 = vld [vmem:[%s0 + $0x8] sm:$0xff]
  %v24 = vld [vmem:[%s0 + $0x10] sm:$0xff]
  %v25 = vld [vmem:[%s0 + $0x18] sm:$0xff]
  %v26 = vld [vmem:[%s0 + $0x20] sm:$0xff]
  %v27 = vld [vmem:[%s0 + $0x28] sm:$0xff]
  %v28 = vld [vmem:[%s0 + $0x30] sm:$0xff]
  %v29 = vld [vmem:[%s0 + $0x38] sm:$0xff]
  %v30 = vld [vmem:[%s0 + $0x40] sm:$0xff]
  %v31 = vld [vmem:[%s0 + $0x48] sm:$0xff]
  %v32 = vld [vmem:[%s0 + $0x50] sm:$0xff]
  %v33 = vld [vmem:[%s0 + $0x58] sm:$0xff]
  %v34 = vld [vmem:[%s0 + $0x60] sm:$0xff]
  %v35 = vld [vmem:[%s0 + $0x68] sm:$0xff]
  %v36 = vld [vmem:[%s0 + $0x70] sm:$0xff]
  %v37 = vld [vmem:[%s0 + $0x78] sm:$0xff]
  %v38 = vld [vmem:[%s0 + $0x80] sm:$0xff]
  %v39 = vld [vmem:[%s0 + $0x88] sm:$0xff]
  %v40 = vld [vmem:[%s0 + $0x90] sm:$0xff]
  %v41 = vld [vmem:[%s0 + $0x98] sm:$0xff]
  %v42 = vld [vmem:[%s0 + $0xa0] sm:$0xff]
  %v43 = vld [vmem:[%s0 + $0xa8] sm:$0xff]
  %v44 = vld [vmem:[%s0 + $0xb0] sm:$0xff]
  %v45 = vld [vmem:[%s0 + $0xb8] sm:$0xff]
  %v46 = vld [vmem:[%s0 + $0xc0] sm:$0xff]
  %v47 = vld [vmem:[%s0 + $0xc8] sm:$0xff]
  %v48 = vld [vmem:[%s0 + $0xd0] sm:$0xff]
  %v49 = vld [vmem:[%s0 + $0xd8] sm:$0xff]
  %v50 = vld [vmem:[%s0 + $0xe0] sm:$0xff]
  %v51 = vld [vmem:[%s0 + $0xe8] sm:$0xff]
  %v52 = vld [vmem:[%s0 + $0xf0] sm:$0xff]
  %v53 = vld [vmem:[%s0 + $0xf8] sm:$0xff]
  %v54 = vld [vmem:[%s0 + $0x100] sm:$0xff]
  %v55 = vld [vmem:[%s0 + $0x108] sm:$0xff]
  %v56 = vld [vmem:[%s0 + $0x110] sm:$0xff]
  %v57 = vld [vmem:[%s0 + $0x118] sm:$0xff]
  %v58 = vld [vmem:[%s0 + $0x120] sm:$0xff]
  %v59 = vld [vmem:[%s0 + $0x128] sm:$0xff]
  %v60 = vld [vmem:[%s0 + $0x130] sm:$0xff]
  %v61 = vld [vmem:[%s0 + $0x138] sm:$0xff]
  %v62 = vld [vmem:[%s0 + $0x140] sm:$0xff]
  %v63 = vld [vmem:[%s0 + $0x148] sm:$0xff]
  %v64 = vld [vmem:[%s0 + $0x150] sm:$0xff]
  %v65 = vld [vmem:[%s0 + $0x158] sm:$0xff]
  %v66 = vld [vmem:[%s0 + $0x160] sm:$0xff]
  %v67 = vld [vmem:[%s0 + $0x168] sm:$0xff]
  %v68 = vld [vmem:[%s0 + $0x170] sm:$0xff]
  %v69 = vld [vmem:[%s0 + $0x178] sm:$0xff]
  %v70 = vld [vmem:[%s0 + $0x180] sm:$0xff]
  %v71 = vld [vmem:[%s0 + $0x188] sm:$0xff]
  %v72 = vld [vmem:[%s0 + $0x190] sm:$0xff]
  %v73 = vld [vmem:[%s0 + $0x198] sm:$0xff]
  %v74 = vld [vmem:[%s0 + $0x1a0] sm:$0xff]
  %v75 = vld [vmem:[%s0 + $0x1a8] sm:$0xff]
  %v76 = vld [vmem:[%s0 + $0x1b0] sm:$0xff]
  %v77 = vld [vmem:[%s0 + $0x1b8] sm:$0xff]
  %v78 = vld [vmem:[%s0 + $0x1c0] sm:$0xff]
  %v79 = vld [vmem:[%s0 + $0x1c8] sm:$0xff]
  %v80 = vld [vmem:[%s0 + $0x1d0] sm:$0xff]
  %v81 = vld [vmem:[%s0 + $0x1d8] sm:$0xff]
  %v82 = vld [vmem:[%s0 + $0x1e0] sm:$0xff]
  %v83 = vld [vmem:[%s0 + $0x1e8] sm:$0xff]
  %v84 = vld [vmem:[%s0 + $0x1f0] sm:$0xff]
  %v85 = vld [vmem:[%s0 + $0x1f8] sm:$0xff]
  %v86 = vld [vmem:[%s0 + $0x200] sm:$0xff]
  %v87 = vld [vmem:[%s0 + $0x208] sm:$0xff]
  %v88 = vld [vmem:[%s0 + $0x210] sm:$0xff]
  %v89 = vld [vmem:[%s0 + $0x218] sm:$0xff]
  %v90 = vld [vmem:[%s0 + $0x220] sm:$0xff]
  %v91 = vld [vmem:[%s0 + $0x228] sm:$0xff]
  %v92 = vld [vmem:[%s0 + $0x230] sm:$0xff]
  %v93 = vld [vmem:[%s0 + $0x238] sm:$0xff]
  %v94 = vld [vmem:[%s0 + $0x240] sm:$0xff]
  %v95 = vld [vmem:[%s0 + $0x248] sm:$0xff]
  %v96 = vld [vmem:[%s0 + $0x250] sm:$0xff]
  %v97 = vld [vmem:[%s0 + $0x258] sm:$0xff]
  %v98 = vld [vmem:[%s0 + $0x260] sm:$0xff]
  %v99 = vld [vmem:[%s0 + $0x268] sm:$0xff]
  %v100 = vld [vmem:[%s0 + $0x270] sm:$0xff]
  %v101 = vld [vmem:[%s0 + $0x278] sm:$0xff]
  %v102 = vld [vmem:[%s0 + $0x280] sm:$0xff]
  %v103 = vld [vmem:[%s0 + $0x288] sm:$0xff]
  %v104 = vld [vmem:[%s0 + $0x290] sm:$0xff]
  %v105 = vld [vmem:[%s0 + $0x298] sm:$0xff]
  %v106 = vld [vmem:[%s0 + $0x2a0] sm:$0xff]
  %v107 = vld [vmem:[%s0 + $0x2a8] sm:$0xff]
  %v108 = vld [vmem:[%s0 + $0x2b0] sm:$0xff]
  %v109 = vld [vmem:[%s0 + $0x2b8] sm:$0xff]
  %v110 = vld [vmem:[%s0 + $0x2c0] sm:$0xff]
  %v111 = vld [vmem:[%s0 + $0x2c8] sm:$0xff]
  %v112 = vld [vmem:[%s0 + $0x2d0] sm:$0xff]
  %v113 = vld [vmem:[%s0 + $0x2d8] sm:$0xff]
  %v114 = vld [vmem:[%s0 + $0x2e0] sm:$0xff]
  %v115 = vld [vmem:[%s0 + $0x2e8] sm:$0xff]
  %v116 = vld [vmem:[%s0 + $0x2f0] sm:$0xff]
  %v117 = vld [vmem:[%s0 + $0x2f8] sm:$0xff]
  %v118 = vld [vmem:[%s0 + $0x300] sm:$0xff]
  %v119 = vld [vmem:[%s0 + $0x308] sm:$0xff]
  %v120 = vld [vmem:[%s0 + $0x310] sm:$0xff]
  %v121 = vld [vmem:[%s0 + $0x318] sm:$0xff]
  %v122 = vld [vmem:[%s0 + $0x320] sm:$0xff]
  %v123 = vld [vmem:[%s0 + $0x328] sm:$0xff]
  %v124 = vld [vmem:[%s0 + $0x330] sm:$0xff]
  %v125 = vld [vmem:[%s0 + $0x338] sm:$0xff]
  %v126 = vld [vmem:[%s0 + $0x340] sm:$0xff]
  %v127 = vld [vmem:[%s0 + $0x348] sm:$0xff]
  %v128 = vld [vmem:[%s0 + $0x350] sm:$0xff]
  %v129 = vld [vmem:[%s0 + $0x358] sm:$0xff]
  %v130 = vld [vmem:[%s0 + $0x360] sm:$0xff]
  %v131 = vld [vmem:[%s0 + $0x368] sm:$0xff]
  %v132 = vld [vmem:[%s0 + $0x370] sm:$0xff]
  %v133 = vld [vmem:[%s0 + $0x378] sm:$0xff]
  %v134 = vld [vmem:[%s0 + $0x380] sm:$0xff]
  %v135 = vld [vmem:[%s0 + $0x388] sm:$0xff]
  %v136 = vld [vmem:[%s0 + $0x390] sm:$0xff]
  %v137 = vld [vmem:[%s0 + $0x398] sm:$0xff]
  %v138 = vld [vmem:[%s0 + $0x3a0] sm:$0xff]
  %v139 = vld [vmem:[%s0 + $0x3a8] sm:$0xff]
  %v140 = vld [vmem:[%s0 + $0x3b0] sm:$0xff]
  %v141 = vld [vmem:[%s0 + $0x3b8] sm:$0xff]
  %v142 = vld [vmem:[%s0 + $0x3c0] sm:$0xff]
  %v143 = vld [vmem:[%s0 + $0x3c8] sm:$0xff]
  %v144 = vld [vmem:[%s0 + $0x3d0] sm:$0xff]
  %v145 = vld [vmem:[%s0 + $0x3d8] sm:$0xff]
  %v146 = vld [vmem:[%s0 + $0x3e0] sm:$0xff]
  %v147 = vld [vmem:[%s0 + $0x3e8] sm:$0xff]
  %v148 = vld [vmem:[%s0 + $0x3f0] sm:$0xff]
  %v149 = vld [vmem:[%s0 + $0x3f8] sm:$0xff]
  %v150 = vld [vmem:[%s0 + $0x400] sm:$0xff]
  %v151 = vld [vmem:[%s0 + $0x408] sm:$0xff]
  %v152 = vld [vmem:[%s0 + $0x410] sm:$0xff]
  %v153 = vld [vmem:[%s0 + $0x418] sm:$0xff]
  %v154 = vld [vmem:[%s0 + $0x420] sm:$0xff]
  %v155 = vld [vmem:[%s0 + $0x428] sm:$0xff]
  %v156 = vld [vmem:[%s0 + $0x430] sm:$0xff]
  %v157 = vld [vmem:[%s0 + $0x438] sm:$0xff]
  %v158 = vld [vmem:[%s0 + $0x440] sm:$0xff]
  %v159 = vld [vmem:[%s0 + $0x448] sm:$0xff]
  %v160 = vld [vmem:[%s0 + $0x450] sm:$0xff]
  %v161 = vld [vmem:[%s0 + $0x458] sm:$0xff]
  %v162 = vld [vmem:[%s0 + $0x460] sm:$0xff]
  %v163 = vld [vmem:[%s0 + $0x468] sm:$0xff]
  %v164 = vld [vmem:[%s0 + $0x470] sm:$0xff]
  %v165 = vld [vmem:[%s0 + $0x478] sm:$0xff]
  %v166 = vld [vmem:[%s0 + $0x480] sm:$0xff]
  %v167 = vld [vmem:[%s0 + $0x488] sm:$0xff]
  %v168 = vld [vmem:[%s0 + $0x490] sm:$0xff]
  %v169 = vld [vmem:[%s0 + $0x498] sm:$0xff]
  %v170 = vld [vmem:[%s0 + $0x4a0] sm:$0xff]
  %v171 = vld [vmem:[%s0 + $0x4a8] sm:$0xff]
  %v172 = vld [vmem:[%s0 + $0x4b0] sm:$0xff]
  %v173 = vld [vmem:[%s0 + $0x4b8] sm:$0xff]
  %v174 = vld [vmem:[%s0 + $0x4c0] sm:$0xff]
  %v175 = vld [vmem:[%s0 + $0x4c8] sm:$0xff]
  %v176 = vld [vmem:[%s0 + $0x4d0] sm:$0xff]
  %v177 = vld [vmem:[%s0 + $0x4d8] sm:$0xff]
  %v178 = vld [vmem:[%s0 + $0x4e0] sm:$0xff]
  %v179 = vld [vmem:[%s0 + $0x4e8] sm:$0xff]
  %v180 = vld [vmem:[%s0 + $0x4f0] sm:$0xff]
  %v181 = vld [vmem:[%s0 + $0x4f8] sm:$0xff]
  %v182 = vld [vmem:[%s0 + $0x500] sm:$0xff]
  %v183 = vld [vmem:[%s0 + $0x508] sm:$0xff]
  %v184 = vld [vmem:[%s0 + $0x510] sm:$0xff]
  %v185 = vld [vmem:[%s0 + $0x518] sm:$0xff]
  %v186 = vld [vmem:[%s0 + $0x520] sm:$0xff]
  %v187 = vld [vmem:[%s0 + $0x528] sm:$0xff]
  %v188 = vld [vmem:[%s0 + $0x530] sm:$0xff]
  %v189 = vld [vmem:[%s0 + $0x538] sm:$0xff]
  %v190 = vld [vmem:[%s0 + $0x540] sm:$0xff]
  %v191 = vld [vmem:[%s0 + $0x548] sm:$0xff]
  %v192 = vld [vmem:[%s0 + $0x550] sm:$0xff]
  %v193 = vld [vmem:[%s0 + $0x558] sm:$0xff]
  %v194 = vld [vmem:[%s0 + $0x560] sm:$0xff]
  %v195 = vld [vmem:[%s0 + $0x568] sm:$0xff]
  %v196 = vld [vmem:[%s0 + $0x570] sm:$0xff]
  %v197 = vld [vmem:[%s0 + $0x578] sm:$0xff]
  %v198 = vld [vmem:[%s0 + $0x580] sm:$0xff]
  %v199 = vld [vmem:[%s0 + $0x588] sm:$0xff]
  %v200 = vld [vmem:[%s0 + $0x590] sm:$0xff]
  %v201 = vld [vmem:[%s0 + $0x598] sm:$0xff]
  %v202 = vld [vmem:[%s0 + $0x5a0] sm:$0xff]
  %v203 = vld [vmem:[%s0 + $0x5a8] sm:$0xff]
  %v204 = vld [vmem:[%s0 + $0x5b0] sm:$0xff]
  %v205 = vld [vmem:[%s0 + $0x5b8] sm:$0xff]
  %v206 = vld [vmem:[%s0 + $0x5c0] sm:$0xff]
  %v207 = vld [vmem:[%s0 + $0x5c8] sm:$0xff]
  %v208 = vld [vmem:[%s0 + $0x5d0] sm:$0xff]
  %v209 = vld [vmem:[%s0 + $0x5d8] sm:$0xff]
  %v210 = vld [vmem:[%s0 + $0x5e0] sm:$0xff]
  %v211 = vld [vmem:[%s0 + $0x5e8] sm:$0xff]
  %v212 = vld [vmem:[%s0 + $0x5f0] sm:$0xff]
  %v213 = vld [vmem:[%s0 + $0x5f8] sm:$0xff]
  %v214 = vld [vmem:[%s0 + $0x600] sm:$0xff]
  %v215 = vld [vmem:[%s0 + $0x608] sm:$0xff]
  %v216 = vld [vmem:[%s0 + $0x610] sm:$0xff]
  %v217 = vld [vmem:[%s0 + $0x618] sm:$0xff]
  %v218 = vld [vmem:[%s0 + $0x620] sm:$0xff]
  %v219 = vld [vmem:[%s0 + $0x628] sm:$0xff]
  %v220 = vld [vmem:[%s0 + $0x630] sm:$0xff]
  %v221 = vld [vmem:[%s0 + $0x638] sm:$0xff]
  %v222 = vld [vmem:[%s0 + $0x640] sm:$0xff]
  %v223 = vld [vmem:[%s0 + $0x648] sm:$0xff]
  %v224 = vld [vmem:[%s0 + $0x650] sm:$0xff]
  %v225 = vld [vmem:[%s0 + $0x658] sm:$0xff]
  %v226 = vld [vmem:[%s0 + $0x660] sm:$0xff]
  %v227 = vld [vmem:[%s0 + $0x668] sm:$0xff]
  %v228 = vld [vmem:[%s0 + $0x670] sm:$0xff]
  %v229 = vld [vmem:[%s0 + $0x678] sm:$0xff]
  %v230 = vld [vmem:[%s0 + $0x680] sm:$0xff]
  %v231 = vld [vmem:[%s0 + $0x688] sm:$0xff]
  %v232 = vld [vmem:[%s0 + $0x690] sm:$0xff]
  %v233 = vld [vmem:[%s0 + $0x698] sm:$0xff]
  %v234 = vld [vmem:[%s0 + $0x6a0] sm:$0xff]
  %v235 = vld [vmem:[%s0 + $0x6a8] sm:$0xff]
  %v236 = vld [vmem:[%s0 + $0x6b0] sm:$0xff]
  %v237 = vld [vmem:[%s0 + $0x6b8] sm:$0xff]
  %vm238 = vcmask 719872
  %v240 = vsel %vm238, %v21, 0
  %242 = vmatpush.msra.mxu0 %v142
  %243 = vmatpush.msra.mxu0 %v134
  %244 = vmatpush.msra.mxu0 %v126
  %245 = vmatpush.msra.mxu0 %v118
  %246 = vmatpush.msra.mxu0 %v110
  %247 = vmatpush.msra.mxu0 %v102
  %248 = vmatpush.msra.mxu0 %v94
  %249 = vmatpush.msra.mxu0 %v86
  %250 = vmatpush.msra.mxu0 %v78
  %251 = vmatpush.msra.mxu0 %v70
  %252 = vmatpush.msra.mxu0 %v62
  %253 = vmatpush.msra.mxu0 %v54
  %254 = vmatpush.msra.mxu0 %v46
  %255 = vmatpush.msra.mxu0 %v38
  %256 = vmatpush.msra.mxu0 %v30
  %257 = vmatpush.msra.mxu0 %v22
  %258 = vmatmul.f32.gmra.mxu0 %v20
  %v259 = vpop.f32.mrf.mxu0
  %v260 = vadd.f32 0.0, %v259
  %261 = vdwg.mxu0
  %262 = vmatpush.msra.mxu0 0.0
  %263 = vmatpush.msra.mxu0 0.0
  %264 = vmatpush.msra.mxu0 0.0
  %265 = vmatpush.msra.mxu0 0.0
  %266 = vmatpush.msra.mxu0 0.0
  %267 = vmatpush.msra.mxu0 %v230
  %268 = vmatpush.msra.mxu0 %v222
  %269 = vmatpush.msra.mxu0 %v214
  %270 = vmatpush.msra.mxu0 %v206
  %271 = vmatpush.msra.mxu0 %v198
  %272 = vmatpush.msra.mxu0 %v190
  %273 = vmatpush.msra.mxu0 %v182
  %274 = vmatpush.msra.mxu0 %v174
  %275 = vmatpush.msra.mxu0 %v166
  %276 = vmatpush.msra.mxu0 %v158
  %277 = vmatpush.msra.mxu0 %v150
  %278 = vmatmul.f32.gmra.mxu0 %v240
  %v279 = vpop.f32.mrf.mxu0
  %v280 = vadd.f32 %v260, %v279
  %281 = vdwg.mxu0
  %282 = vmatpush.msra.mxu0 %v143
  %283 = vmatpush.msra.mxu0 %v135
  %284 = vmatpush.msra.mxu0 %v127
  %285 = vmatpush.msra.mxu0 %v119
  %286 = vmatpush.msra.mxu0 %v111
  %287 = vmatpush.msra.mxu0 %v103
  %288 = vmatpush.msra.mxu0 %v95
  %289 = vmatpush.msra.mxu0 %v87
  %290 = vmatpush.msra.mxu0 %v79
  %291 = vmatpush.msra.mxu0 %v71
  %292 = vmatpush.msra.mxu0 %v63
  %293 = vmatpush.msra.mxu0 %v55
  %294 = vmatpush.msra.mxu0 %v47
  %295 = vmatpush.msra.mxu0 %v39
  %296 = vmatpush.msra.mxu0 %v31
  %297 = vmatpush.msra.mxu0 %v23
  %298 = vmatmul.f32.gmra.mxu0 %v20
  %v299 = vpop.f32.mrf.mxu0
  %v300 = vadd.f32 0.0, %v299
  %301 = vdwg.mxu0
  %302 = vmatpush.msra.mxu0 0.0
  %303 = vmatpush.msra.mxu0 0.0
  %304 = vmatpush.msra.mxu0 0.0
  %305 = vmatpush.msra.mxu0 0.0
  %306 = vmatpush.msra.mxu0 0.0
  %307 = vmatpush.msra.mxu0 %v231
  %308 = vmatpush.msra.mxu0 %v223
  %309 = vmatpush.msra.mxu0 %v215
  %310 = vmatpush.msra.mxu0 %v207
  %311 = vmatpush.msra.mxu0 %v199
  %312 = vmatpush.msra.mxu0 %v191
  %313 = vmatpush.msra.mxu0 %v183
  %314 = vmatpush.msra.mxu0 %v175
  %315 = vmatpush.msra.mxu0 %v167
  %316 = vmatpush.msra.mxu0 %v159
  %317 = vmatpush.msra.mxu0 %v151
  %318 = vmatmul.f32.gmra.mxu0 %v240
  %v319 = vpop.f32.mrf.mxu0
  %v320 = vadd.f32 %v300, %v319
  %321 = vdwg.mxu0
  %322 = vmatpush.msra.mxu0 %v144
  %323 = vmatpush.msra.mxu0 %v136
  %324 = vmatpush.msra.mxu0 %v128
  %325 = vmatpush.msra.mxu0 %v120
  %326 = vmatpush.msra.mxu0 %v112
  %327 = vmatpush.msra.mxu0 %v104
  %328 = vmatpush.msra.mxu0 %v96
  %329 = vmatpush.msra.mxu0 %v88
  %330 = vmatpush.msra.mxu0 %v80
  %331 = vmatpush.msra.mxu0 %v72
  %332 = vmatpush.msra.mxu0 %v64
  %333 = vmatpush.msra.mxu0 %v56
  %334 = vmatpush.msra.mxu0 %v48
  %335 = vmatpush.msra.mxu0 %v40
  %336 = vmatpush.msra.mxu0 %v32
  %337 = vmatpush.msra.mxu0 %v24
  %338 = vmatmul.f32.gmra.mxu0 %v20
  %v339 = vpop.f32.mrf.mxu0
  %v340 = vadd.f32 0.0, %v339
  %341 = vdwg.mxu0
  %342 = vmatpush.msra.mxu0 0.0
  %343 = vmatpush.msra.mxu0 0.0
  %344 = vmatpush.msra.mxu0 0.0
  %345 = vmatpush.msra.mxu0 0.0
  %346 = vmatpush.msra.mxu0 0.0
  %347 = vmatpush.msra.mxu0 %v232
  %348 = vmatpush.msra.mxu0 %v224
  %349 = vmatpush.msra.mxu0 %v216
  %350 = vmatpush.msra.mxu0 %v208
  %351 = vmatpush.msra.mxu0 %v200
  %352 = vmatpush.msra.mxu0 %v192
  %353 = vmatpush.msra.mxu0 %v184
  %354 = vmatpush.msra.mxu0 %v176
  %355 = vmatpush.msra.mxu0 %v168
  %356 = vmatpush.msra.mxu0 %v160
  %357 = vmatpush.msra.mxu0 %v152
  %358 = vmatmul.f32.gmra.mxu0 %v240
  %v359 = vpop.f32.mrf.mxu0
  %v360 = vadd.f32 %v340, %v359
  %361 = vdwg.mxu0
  %362 = vmatpush.msra.mxu0 %v145
  %363 = vmatpush.msra.mxu0 %v137
  %364 = vmatpush.msra.mxu0 %v129
  %365 = vmatpush.msra.mxu0 %v121
  %366 = vmatpush.msra.mxu0 %v113
  %367 = vmatpush.msra.mxu0 %v105
  %368 = vmatpush.msra.mxu0 %v97
  %369 = vmatpush.msra.mxu0 %v89
  %370 = vmatpush.msra.mxu0 %v81
  %371 = vmatpush.msra.mxu0 %v73
  %372 = vmatpush.msra.mxu0 %v65
  %373 = vmatpush.msra.mxu0 %v57
  %374 = vmatpush.msra.mxu0 %v49
  %375 = vmatpush.msra.mxu0 %v41
  %376 = vmatpush.msra.mxu0 %v33
  %377 = vmatpush.msra.mxu0 %v25
  %378 = vmatmul.f32.gmra.mxu0 %v20
  %v379 = vpop.f32.mrf.mxu0
  %v380 = vadd.f32 0.0, %v379
  %381 = vdwg.mxu0
  %382 = vmatpush.msra.mxu0 0.0
  %383 = vmatpush.msra.mxu0 0.0
  %384 = vmatpush.msra.mxu0 0.0
  %385 = vmatpush.msra.mxu0 0.0
  %386 = vmatpush.msra.mxu0 0.0
  %387 = vmatpush.msra.mxu0 %v233
  %388 = vmatpush.msra.mxu0 %v225
  %389 = vmatpush.msra.mxu0 %v217
  %390 = vmatpush.msra.mxu0 %v209
  %391 = vmatpush.msra.mxu0 %v201
  %392 = vmatpush.msra.mxu0 %v193
  %393 = vmatpush.msra.mxu0 %v185
  %394 = vmatpush.msra.mxu0 %v177
  %395 = vmatpush.msra.mxu0 %v169
  %396 = vmatpush.msra.mxu0 %v161
  %397 = vmatpush.msra.mxu0 %v153
  %398 = vmatmul.f32.gmra.mxu0 %v240
  %v399 = vpop.f32.mrf.mxu0
  %v400 = vadd.f32 %v380, %v399
  %401 = vdwg.mxu0
  %402 = vmatpush.msra.mxu0 %v146
  %403 = vmatpush.msra.mxu0 %v138
  %404 = vmatpush.msra.mxu0 %v130
  %405 = vmatpush.msra.mxu0 %v122
  %406 = vmatpush.msra.mxu0 %v114
  %407 = vmatpush.msra.mxu0 %v106
  %408 = vmatpush.msra.mxu0 %v98
  %409 = vmatpush.msra.mxu0 %v90
  %410 = vmatpush.msra.mxu0 %v82
  %411 = vmatpush.msra.mxu0 %v74
  %412 = vmatpush.msra.mxu0 %v66
  %413 = vmatpush.msra.mxu0 %v58
  %414 = vmatpush.msra.mxu0 %v50
  %415 = vmatpush.msra.mxu0 %v42
  %416 = vmatpush.msra.mxu0 %v34
  %417 = vmatpush.msra.mxu0 %v26
  %418 = vmatmul.f32.gmra.mxu0 %v20
  %v419 = vpop.f32.mrf.mxu0
  %v420 = vadd.f32 0.0, %v419
  %421 = vdwg.mxu0
  %422 = vmatpush.msra.mxu0 0.0
  %423 = vmatpush.msra.mxu0 0.0
  %424 = vmatpush.msra.mxu0 0.0
  %425 = vmatpush.msra.mxu0 0.0
  %426 = vmatpush.msra.mxu0 0.0
  %427 = vmatpush.msra.mxu0 %v234
  %428 = vmatpush.msra.mxu0 %v226
  %429 = vmatpush.msra.mxu0 %v218
  %430 = vmatpush.msra.mxu0 %v210
  %431 = vmatpush.msra.mxu0 %v202
  %432 = vmatpush.msra.mxu0 %v194
  %433 = vmatpush.msra.mxu0 %v186
  %434 = vmatpush.msra.mxu0 %v178
  %435 = vmatpush.msra.mxu0 %v170
  %436 = vmatpush.msra.mxu0 %v162
  %437 = vmatpush.msra.mxu0 %v154
  %438 = vmatmul.f32.gmra.mxu0 %v240
  %v439 = vpop.f32.mrf.mxu0
  %v440 = vadd.f32 %v420, %v439
  %441 = vdwg.mxu0
  %442 = vmatpush.msra.mxu0 %v147
  %443 = vmatpush.msra.mxu0 %v139
  %444 = vmatpush.msra.mxu0 %v131
  %445 = vmatpush.msra.mxu0 %v123
  %446 = vmatpush.msra.mxu0 %v115
  %447 = vmatpush.msra.mxu0 %v107
  %448 = vmatpush.msra.mxu0 %v99
  %449 = vmatpush.msra.mxu0 %v91
  %450 = vmatpush.msra.mxu0 %v83
  %451 = vmatpush.msra.mxu0 %v75
  %452 = vmatpush.msra.mxu0 %v67
  %453 = vmatpush.msra.mxu0 %v59
  %454 = vmatpush.msra.mxu0 %v51
  %455 = vmatpush.msra.mxu0 %v43
  %456 = vmatpush.msra.mxu0 %v35
  %457 = vmatpush.msra.mxu0 %v27
  %458 = vmatmul.f32.gmra.mxu0 %v20
  %v459 = vpop.f32.mrf.mxu0
  %v460 = vadd.f32 0.0, %v459
  %461 = vdwg.mxu0
  %462 = vmatpush.msra.mxu0 0.0
  %463 = vmatpush.msra.mxu0 0.0
  %464 = vmatpush.msra.mxu0 0.0
  %465 = vmatpush.msra.mxu0 0.0
  %466 = vmatpush.msra.mxu0 0.0
  %467 = vmatpush.msra.mxu0 %v235
  %468 = vmatpush.msra.mxu0 %v227
  %469 = vmatpush.msra.mxu0 %v219
  %470 = vmatpush.msra.mxu0 %v211
  %471 = vmatpush.msra.mxu0 %v203
  %472 = vmatpush.msra.mxu0 %v195
  %473 = vmatpush.msra.mxu0 %v187
  %474 = vmatpush.msra.mxu0 %v179
  %475 = vmatpush.msra.mxu0 %v171
  %476 = vmatpush.msra.mxu0 %v163
  %477 = vmatpush.msra.mxu0 %v155
  %478 = vmatmul.f32.gmra.mxu0 %v240
  %v479 = vpop.f32.mrf.mxu0
  %v480 = vadd.f32 %v460, %v479
  %481 = vdwg.mxu0
  %482 = vmatpush.msra.mxu0 %v148
  %483 = vmatpush.msra.mxu0 %v140
  %484 = vmatpush.msra.mxu0 %v132
  %485 = vmatpush.msra.mxu0 %v124
  %486 = vmatpush.msra.mxu0 %v116
  %487 = vmatpush.msra.mxu0 %v108
  %488 = vmatpush.msra.mxu0 %v100
  %489 = vmatpush.msra.mxu0 %v92
  %490 = vmatpush.msra.mxu0 %v84
  %491 = vmatpush.msra.mxu0 %v76
  %492 = vmatpush.msra.mxu0 %v68
  %493 = vmatpush.msra.mxu0 %v60
  %494 = vmatpush.msra.mxu0 %v52
  %495 = vmatpush.msra.mxu0 %v44
  %496 = vmatpush.msra.mxu0 %v36
  %497 = vmatpush.msra.mxu0 %v28
  %498 = vmatmul.f32.gmra.mxu0 %v20
  %v499 = vpop.f32.mrf.mxu0
  %v500 = vadd.f32 0.0, %v499
  %501 = vdwg.mxu0
  %502 = vmatpush.msra.mxu0 0.0
  %503 = vmatpush.msra.mxu0 0.0
  %504 = vmatpush.msra.mxu0 0.0
  %505 = vmatpush.msra.mxu0 0.0
  %506 = vmatpush.msra.mxu0 0.0
  %507 = vmatpush.msra.mxu0 %v236
  %508 = vmatpush.msra.mxu0 %v228
  %509 = vmatpush.msra.mxu0 %v220
  %510 = vmatpush.msra.mxu0 %v212
  %511 = vmatpush.msra.mxu0 %v204
  %512 = vmatpush.msra.mxu0 %v196
  %513 = vmatpush.msra.mxu0 %v188
  %514 = vmatpush.msra.mxu0 %v180
  %515 = vmatpush.msra.mxu0 %v172
  %516 = vmatpush.msra.mxu0 %v164
  %517 = vmatpush.msra.mxu0 %v156
  %518 = vmatmul.f32.gmra.mxu0 %v240
  %v519 = vpop.f32.mrf.mxu0
  %v520 = vadd.f32 %v500, %v519
  %521 = vdwg.mxu0
  %522 = vmatpush.msra.mxu0 %v149
  %523 = vmatpush.msra.mxu0 %v141
  %524 = vmatpush.msra.mxu0 %v133
  %525 = vmatpush.msra.mxu0 %v125
  %526 = vmatpush.msra.mxu0 %v117
  %527 = vmatpush.msra.mxu0 %v109
  %528 = vmatpush.msra.mxu0 %v101
  %529 = vmatpush.msra.mxu0 %v93
  %530 = vmatpush.msra.mxu0 %v85
  %531 = vmatpush.msra.mxu0 %v77
  %532 = vmatpush.msra.mxu0 %v69
  %533 = vmatpush.msra.mxu0 %v61
  %534 = vmatpush.msra.mxu0 %v53
  %535 = vmatpush.msra.mxu0 %v45
  %536 = vmatpush.msra.mxu0 %v37
  %537 = vmatpush.msra.mxu0 %v29
  %538 = vmatmul.f32.gmra.mxu0 %v20
  %v539 = vpop.f32.mrf.mxu0
  %v540 = vadd.f32 0.0, %v539
  %541 = vdwg.mxu0
  %542 = vmatpush.msra.mxu0 0.0
  %543 = vmatpush.msra.mxu0 0.0
  %544 = vmatpush.msra.mxu0 0.0
  %545 = vmatpush.msra.mxu0 0.0
  %546 = vmatpush.msra.mxu0 0.0
  %547 = vmatpush.msra.mxu0 %v237
  %548 = vmatpush.msra.mxu0 %v229
  %549 = vmatpush.msra.mxu0 %v221
  %550 = vmatpush.msra.mxu0 %v213
  %551 = vmatpush.msra.mxu0 %v205
  %552 = vmatpush.msra.mxu0 %v197
  %553 = vmatpush.msra.mxu0 %v189
  %554 = vmatpush.msra.mxu0 %v181
  %555 = vmatpush.msra.mxu0 %v173
  %556 = vmatpush.msra.mxu0 %v165
  %557 = vmatpush.msra.mxu0 %v157
  %558 = vmatmul.f32.gmra.mxu0 %v240
  %v559 = vpop.f32.mrf.mxu0
  %v560 = vadd.f32 %v540, %v559
  %561 = vdwg.mxu0
  %v562 = vadd.f32 %v280, %v320
  %v563 = vadd.f32 %v562, %v360
  %v564 = vadd.f32 %v563, %v400
  %v565 = vadd.f32 %v564, %v440
  %v566 = vadd.f32 %v565, %v480
  %v567 = vadd.f32 %v566, %v520
  %v568 = vadd.f32 %v567, %v560
  %569 = vadd.xlane.f32.xlu0 %v568
  %v570 = vpop.xlane.xlu0 %569
  %v571 = vmul.f32 %v570, 0.0009765625
  %v572 = vsub.f32 %v280, %v571
  %v573 = vsub.f32 %v320, %v571
  %v574 = vsub.f32 %v360, %v571
  %v575 = vsub.f32 %v400, %v571
  %v576 = vsub.f32 %v440, %v571
  %v577 = vsub.f32 %v480, %v571
  %v578 = vsub.f32 %v520, %v571
  %v579 = vsub.f32 %v560, %v571
  %v580 = vmul.f32 %v572, %v572
  %v581 = vmul.f32 %v573, %v573
  %v582 = vmul.f32 %v574, %v574
  %v583 = vmul.f32 %v575, %v575
  %v584 = vmul.f32 %v576, %v576
  %v585 = vmul.f32 %v577, %v577
  %v586 = vmul.f32 %v578, %v578
  %v587 = vmul.f32 %v579, %v579
  %v588 = vadd.f32 %v580, %v581
  %v589 = vadd.f32 %v588, %v582
  %v590 = vadd.f32 %v589, %v583
  %v591 = vadd.f32 %v590, %v584
  %v592 = vadd.f32 %v591, %v585
  %v593 = vadd.f32 %v592, %v586
  %v594 = vadd.f32 %v593, %v587
  %595 = vadd.xlane.f32.xlu0 %v594
  %v596 = vpop.xlane.xlu0 %595
  %v597 = vmul.f32 %v596, 0.0009765625
  %v598 = vld [vmem:[%s2] sm:$0xff]
  %v599 = vadd.f32 %v597, 1e-05
  %v600 = vrsqrt.pop %v599
  %v601 = vmul.f32 %v600, %v599
  %v602 = vmul.f32 %v601, %v600
  %v603 = vmul.f32 0.5, %v602
  %v604 = vsub.f32 1.5, %v603
  %v605 = vmul.f32 %v600, %v604
  %vm606 = vweird.f32 %v599
  %vm607 = vweird.f32 %v600
  %vm608 = vmor %vm606, %vm607
  %v609 = vsel %vm608, %v600, %v605
  %v610 = vmul.f32 %v598, %v609
  %v611 = vld [vmem:[%s3] sm:$0xff]
  %v612 = vmul.f32 %v571, %v610
  %v613 = vsub.f32 %v611, %v612
  %615 = vset.pattern.permute.xlu0 0
  %616 = vperm.xlu0 %615, %v610
  %v617 = vpop.permute.xlu0 %616
  %v619 = vmul.f32 %v280, %v617
  %v620 = vmul.f32 %v320, %v617
  %v621 = vmul.f32 %v360, %v617
  %v622 = vmul.f32 %v400, %v617
  %v623 = vmul.f32 %v440, %v617
  %v624 = vmul.f32 %v480, %v617
  %v625 = vmul.f32 %v520, %v617
  %v626 = vmul.f32 %v560, %v617
  %628 = vset.pattern.permute.xlu0 0
  %629 = vperm.xlu0 %628, %v613
  %v630 = vpop.permute.xlu0 %629
  %v632 = vadd.f32 %v619, %v630
  %v633 = vadd.f32 %v620, %v630
  %v634 = vadd.f32 %v621, %v630
  %v635 = vadd.f32 %v622, %v630
  %v636 = vadd.f32 %v623, %v630
  %v637 = vadd.f32 %v624, %v630
  %v638 = vadd.f32 %v625, %v630
  %v639 = vadd.f32 %v626, %v630
  %v640 = vld [vmem:[%s4] sm:$0xff]
  %v641 = vld [vmem:[%s4 + $0x8] sm:$0xff]
  %v642 = vld [vmem:[%s4 + $0x10] sm:$0xff]
  %v643 = vld [vmem:[%s4 + $0x18] sm:$0xff]
  %v644 = vld [vmem:[%s4 + $0x20] sm:$0xff]
  %v645 = vld [vmem:[%s4 + $0x28] sm:$0xff]
  %v646 = vld [vmem:[%s4 + $0x30] sm:$0xff]
  %v647 = vld [vmem:[%s4 + $0x38] sm:$0xff]
  %v648 = vadd.f32 %v632, %v640
  %v649 = vadd.f32 %v633, %v641
  %v650 = vadd.f32 %v634, %v642
  %v651 = vadd.f32 %v635, %v643
  %v652 = vadd.f32 %v636, %v644
  %v653 = vadd.f32 %v637, %v645
  %v654 = vadd.f32 %v638, %v646
  %v655 = vadd.f32 %v639, %v647
  %v656 = vmax.f32 %v648, 0.0
  %v657 = vmax.f32 %v649, 0.0
  %v658 = vmax.f32 %v650, 0.0
  %v659 = vmax.f32 %v651, 0.0
  %v660 = vmax.f32 %v652, 0.0
  %v661 = vmax.f32 %v653, 0.0
  %v662 = vmax.f32 %v654, 0.0
  %v663 = vmax.f32 %v655, 0.0
  %664 = vst [vmem:[%s5] sm:$0xff] %v656
  %665 = vst [vmem:[%s5 + $0x8] sm:$0xff] %v657
  %666 = vst [vmem:[%s5 + $0x10] sm:$0xff] %v658
  %667 = vst [vmem:[%s5 + $0x18] sm:$0xff] %v659
  %668 = vst [vmem:[%s5 + $0x20] sm:$0xff] %v660
  %669 = vst [vmem:[%s5 + $0x28] sm:$0xff] %v661
  %670 = vst [vmem:[%s5 + $0x30] sm:$0xff] %v662
  %671 = vst [vmem:[%s5 + $0x38] sm:$0xff] %v663
  // Predicated region
  $region22: #{_lambda_.7} parent=0 // pred_check
    _
  $region23: #{_lambda_.7} parent=0 // pred_check_branch
    %673 = sbr.rel (0) target = $region25
  $region24: #{_lambda_.7} parent=0 // pred_region
    _
  $region25: #{_lambda_.7} parent=0 // pred_fallthru
    _
  // Predicated region
  $region26: #{_lambda_.7} parent=0 // pred_check
    _
  $region27: #{_lambda_.7} parent=0 // pred_check_branch
    %675 = sbr.rel (0) target = $region29
  $region28: #{_lambda_.7} parent=0 // pred_region
    _
  $region29: #{_lambda_.7} parent=0 // pred_fallthru
    _

// kernel: _lambda_.8
$region0: #{_lambda_.8}
  #allocation0 [shape = 'u32[]', space=smem, size = 0x4, offset = 0x4, fixed_abs, tag = 'smem constant byte address 0x4 - core index']
  #allocation1 [shape = 'u32[72,128]{1,0:T(1,128)}', space=vmem, size = 0x9000, scoped, tag = 'internal scratch']
  %s0 = inlined_call_operand.vmem [shape: f32[216,1024], index: 0, kind: input, shape index: {}]
  %s1 = inlined_call_operand.vmem [shape: f32[8,216], index: 1, kind: input, shape index: {}]
  %s2 = inlined_call_operand.vmem [shape: f32[8,1], index: 2, kind: input, shape index: {}]
  %s3 = inlined_call_operand.vmem [shape: f32[8,1], index: 3, kind: input, shape index: {}]
  %s4 = inlined_call_operand.vmem [shape: f32[8,1024], index: 4, kind: output, shape index: {}]
  %s5 = sld [smem:[#allocation0]]
  $region26: #{_lambda_.8} parent=0
    _
  %s7 = ssub.s32 1, %s5
  %s8 = scalar_select 0, %s7, %s5
  // Predicated region
  $region2: #{_lambda_.8} parent=0 // pred_check
    _
  $region3: #{_lambda_.8} parent=0 // pred_check_branch
    %10 = sbr.rel (0) target = $region5
  $region4: #{_lambda_.8} parent=0 // pred_region
    _
  $region5: #{_lambda_.8} parent=0 // pred_fallthru
    _
  // Predicated region
  $region6: #{_lambda_.8} parent=0 // pred_check
    _
  $region7: #{_lambda_.8} parent=0 // pred_check_branch
    %12 = sbr.rel (0) target = $region9
  $region8: #{_lambda_.8} parent=0 // pred_region
    _
  $region9: #{_lambda_.8} parent=0 // pred_fallthru
    _
  // Predicated region
  $region10: #{_lambda_.8} parent=0 // pred_check
    _
  $region11: #{_lambda_.8} parent=0 // pred_check_branch
    %14 = sbr.rel (0) target = $region13
  $region12: #{_lambda_.8} parent=0 // pred_region
    _
  $region13: #{_lambda_.8} parent=0 // pred_fallthru
    _
  // Predicated region
  $region14: #{_lambda_.8} parent=0 // pred_check
    _
  $region15: #{_lambda_.8} parent=0 // pred_check_branch
    %16 = sbr.rel (0) target = $region17
  $region16: #{_lambda_.8} parent=0 // pred_region
    _
  $region17: #{_lambda_.8} parent=0 // pred_fallthru
    _
  %v17 = vld [vmem:[%s1] sm:$0xff]
  %v18 = vld [vmem:[%s1 + $0x8] sm:$0xff]
  %v19 = vld [vmem:[%s0] sm:$0xff]
  %v20 = vld [vmem:[%s0 + $0x8] sm:$0xff]
  %v21 = vld [vmem:[%s0 + $0x10] sm:$0xff]
  %v22 = vld [vmem:[%s0 + $0x18] sm:$0xff]
  %v23 = vld [vmem:[%s0 + $0x20] sm:$0xff]
  %v24 = vld [vmem:[%s0 + $0x28] sm:$0xff]
  %v25 = vld [vmem:[%s0 + $0x30] sm:$0xff]
  %v26 = vld [vmem:[%s0 + $0x38] sm:$0xff]
  %v27 = vld [vmem:[%s0 + $0x40] sm:$0xff]
  %v28 = vld [vmem:[%s0 + $0x48] sm:$0xff]
  %v29 = vld [vmem:[%s0 + $0x50] sm:$0xff]
  %v30 = vld [vmem:[%s0 + $0x58] sm:$0xff]
  %v31 = vld [vmem:[%s0 + $0x60] sm:$0xff]
  %v32 = vld [vmem:[%s0 + $0x68] sm:$0xff]
  %v33 = vld [vmem:[%s0 + $0x70] sm:$0xff]
  %v34 = vld [vmem:[%s0 + $0x78] sm:$0xff]
  %v35 = vld [vmem:[%s0 + $0x80] sm:$0xff]
  %v36 = vld [vmem:[%s0 + $0x88] sm:$0xff]
  %v37 = vld [vmem:[%s0 + $0x90] sm:$0xff]
  %v38 = vld [vmem:[%s0 + $0x98] sm:$0xff]
  %v39 = vld [vmem:[%s0 + $0xa0] sm:$0xff]
  %v40 = vld [vmem:[%s0 + $0xa8] sm:$0xff]
  %v41 = vld [vmem:[%s0 + $0xb0] sm:$0xff]
  %v42 = vld [vmem:[%s0 + $0xb8] sm:$0xff]
  %v43 = vld [vmem:[%s0 + $0xc0] sm:$0xff]
  %v44 = vld [vmem:[%s0 + $0xc8] sm:$0xff]
  %v45 = vld [vmem:[%s0 + $0xd0] sm:$0xff]
  %v46 = vld [vmem:[%s0 + $0xd8] sm:$0xff]
  %v47 = vld [vmem:[%s0 + $0xe0] sm:$0xff]
  %v48 = vld [vmem:[%s0 + $0xe8] sm:$0xff]
  %v49 = vld [vmem:[%s0 + $0xf0] sm:$0xff]
  %v50 = vld [vmem:[%s0 + $0xf8] sm:$0xff]
  %v51 = vld [vmem:[%s0 + $0x100] sm:$0xff]
  %v52 = vld [vmem:[%s0 + $0x108] sm:$0xff]
  %v53 = vld [vmem:[%s0 + $0x110] sm:$0xff]
  %v54 = vld [vmem:[%s0 + $0x118] sm:$0xff]
  %v55 = vld [vmem:[%s0 + $0x120] sm:$0xff]
  %v56 = vld [vmem:[%s0 + $0x128] sm:$0xff]
  %v57 = vld [vmem:[%s0 + $0x130] sm:$0xff]
  %v58 = vld [vmem:[%s0 + $0x138] sm:$0xff]
  %v59 = vld [vmem:[%s0 + $0x140] sm:$0xff]
  %v60 = vld [vmem:[%s0 + $0x148] sm:$0xff]
  %v61 = vld [vmem:[%s0 + $0x150] sm:$0xff]
  %v62 = vld [vmem:[%s0 + $0x158] sm:$0xff]
  %v63 = vld [vmem:[%s0 + $0x160] sm:$0xff]
  %v64 = vld [vmem:[%s0 + $0x168] sm:$0xff]
  %v65 = vld [vmem:[%s0 + $0x170] sm:$0xff]
  %v66 = vld [vmem:[%s0 + $0x178] sm:$0xff]
  %v67 = vld [vmem:[%s0 + $0x180] sm:$0xff]
  %v68 = vld [vmem:[%s0 + $0x188] sm:$0xff]
  %v69 = vld [vmem:[%s0 + $0x190] sm:$0xff]
  %v70 = vld [vmem:[%s0 + $0x198] sm:$0xff]
  %v71 = vld [vmem:[%s0 + $0x1a0] sm:$0xff]
  %v72 = vld [vmem:[%s0 + $0x1a8] sm:$0xff]
  %v73 = vld [vmem:[%s0 + $0x1b0] sm:$0xff]
  %v74 = vld [vmem:[%s0 + $0x1b8] sm:$0xff]
  %v75 = vld [vmem:[%s0 + $0x1c0] sm:$0xff]
  %v76 = vld [vmem:[%s0 + $0x1c8] sm:$0xff]
  %v77 = vld [vmem:[%s0 + $0x1d0] sm:$0xff]
  %v78 = vld [vmem:[%s0 + $0x1d8] sm:$0xff]
  %v79 = vld [vmem:[%s0 + $0x1e0] sm:$0xff]
  %v80 = vld [vmem:[%s0 + $0x1e8] sm:$0xff]
  %v81 = vld [vmem:[%s0 + $0x1f0] sm:$0xff]
  %v82 = vld [vmem:[%s0 + $0x1f8] sm:$0xff]
  %v83 = vld [vmem:[%s0 + $0x200] sm:$0xff]
  %v84 = vld [vmem:[%s0 + $0x208] sm:$0xff]
  %v85 = vld [vmem:[%s0 + $0x210] sm:$0xff]
  %v86 = vld [vmem:[%s0 + $0x218] sm:$0xff]
  %v87 = vld [vmem:[%s0 + $0x220] sm:$0xff]
  %v88 = vld [vmem:[%s0 + $0x228] sm:$0xff]
  %v89 = vld [vmem:[%s0 + $0x230] sm:$0xff]
  %v90 = vld [vmem:[%s0 + $0x238] sm:$0xff]
  %v91 = vld [vmem:[%s0 + $0x240] sm:$0xff]
  %v92 = vld [vmem:[%s0 + $0x248] sm:$0xff]
  %v93 = vld [vmem:[%s0 + $0x250] sm:$0xff]
  %v94 = vld [vmem:[%s0 + $0x258] sm:$0xff]
  %v95 = vld [vmem:[%s0 + $0x260] sm:$0xff]
  %v96 = vld [vmem:[%s0 + $0x268] sm:$0xff]
  %v97 = vld [vmem:[%s0 + $0x270] sm:$0xff]
  %v98 = vld [vmem:[%s0 + $0x278] sm:$0xff]
  %v99 = vld [vmem:[%s0 + $0x280] sm:$0xff]
  %v100 = vld [vmem:[%s0 + $0x288] sm:$0xff]
  %v101 = vld [vmem:[%s0 + $0x290] sm:$0xff]
  %v102 = vld [vmem:[%s0 + $0x298] sm:$0xff]
  %v103 = vld [vmem:[%s0 + $0x2a0] sm:$0xff]
  %v104 = vld [vmem:[%s0 + $0x2a8] sm:$0xff]
  %v105 = vld [vmem:[%s0 + $0x2b0] sm:$0xff]
  %v106 = vld [vmem:[%s0 + $0x2b8] sm:$0xff]
  %v107 = vld [vmem:[%s0 + $0x2c0] sm:$0xff]
  %v108 = vld [vmem:[%s0 + $0x2c8] sm:$0xff]
  %v109 = vld [vmem:[%s0 + $0x2d0] sm:$0xff]
  %v110 = vld [vmem:[%s0 + $0x2d8] sm:$0xff]
  %v111 = vld [vmem:[%s0 + $0x2e0] sm:$0xff]
  %v112 = vld [vmem:[%s0 + $0x2e8] sm:$0xff]
  %v113 = vld [vmem:[%s0 + $0x2f0] sm:$0xff]
  %v114 = vld [vmem:[%s0 + $0x2f8] sm:$0xff]
  %v115 = vld [vmem:[%s0 + $0x300] sm:$0xff]
  %v116 = vld [vmem:[%s0 + $0x308] sm:$0xff]
  %v117 = vld [vmem:[%s0 + $0x310] sm:$0xff]
  %v118 = vld [vmem:[%s0 + $0x318] sm:$0xff]
  %v119 = vld [vmem:[%s0 + $0x320] sm:$0xff]
  %v120 = vld [vmem:[%s0 + $0x328] sm:$0xff]
  %v121 = vld [vmem:[%s0 + $0x330] sm:$0xff]
  %v122 = vld [vmem:[%s0 + $0x338] sm:$0xff]
  %v123 = vld [vmem:[%s0 + $0x340] sm:$0xff]
  %v124 = vld [vmem:[%s0 + $0x348] sm:$0xff]
  %v125 = vld [vmem:[%s0 + $0x350] sm:$0xff]
  %v126 = vld [vmem:[%s0 + $0x358] sm:$0xff]
  %v127 = vld [vmem:[%s0 + $0x360] sm:$0xff]
  %v128 = vld [vmem:[%s0 + $0x368] sm:$0xff]
  %v129 = vld [vmem:[%s0 + $0x370] sm:$0xff]
  %v130 = vld [vmem:[%s0 + $0x378] sm:$0xff]
  %v131 = vld [vmem:[%s0 + $0x380] sm:$0xff]
  %v132 = vld [vmem:[%s0 + $0x388] sm:$0xff]
  %v133 = vld [vmem:[%s0 + $0x390] sm:$0xff]
  %v134 = vld [vmem:[%s0 + $0x398] sm:$0xff]
  %v135 = vld [vmem:[%s0 + $0x3a0] sm:$0xff]
  %v136 = vld [vmem:[%s0 + $0x3a8] sm:$0xff]
  %v137 = vld [vmem:[%s0 + $0x3b0] sm:$0xff]
  %v138 = vld [vmem:[%s0 + $0x3b8] sm:$0xff]
  %v139 = vld [vmem:[%s0 + $0x3c0] sm:$0xff]
  %v140 = vld [vmem:[%s0 + $0x3c8] sm:$0xff]
  %v141 = vld [vmem:[%s0 + $0x3d0] sm:$0xff]
  %v142 = vld [vmem:[%s0 + $0x3d8] sm:$0xff]
  %v143 = vld [vmem:[%s0 + $0x3e0] sm:$0xff]
  %v144 = vld [vmem:[%s0 + $0x3e8] sm:$0xff]
  %v145 = vld [vmem:[%s0 + $0x3f0] sm:$0xff]
  %v146 = vld [vmem:[%s0 + $0x3f8] sm:$0xff]
  %v147 = vld [vmem:[%s0 + $0x400] sm:$0xff]
  %v148 = vld [vmem:[%s0 + $0x408] sm:$0xff]
  %v149 = vld [vmem:[%s0 + $0x410] sm:$0xff]
  %v150 = vld [vmem:[%s0 + $0x418] sm:$0xff]
  %v151 = vld [vmem:[%s0 + $0x420] sm:$0xff]
  %v152 = vld [vmem:[%s0 + $0x428] sm:$0xff]
  %v153 = vld [vmem:[%s0 + $0x430] sm:$0xff]
  %v154 = vld [vmem:[%s0 + $0x438] sm:$0xff]
  %v155 = vld [vmem:[%s0 + $0x440] sm:$0xff]
  %v156 = vld [vmem:[%s0 + $0x448] sm:$0xff]
  %v157 = vld [vmem:[%s0 + $0x450] sm:$0xff]
  %v158 = vld [vmem:[%s0 + $0x458] sm:$0xff]
  %v159 = vld [vmem:[%s0 + $0x460] sm:$0xff]
  %v160 = vld [vmem:[%s0 + $0x468] sm:$0xff]
  %v161 = vld [vmem:[%s0 + $0x470] sm:$0xff]
  %v162 = vld [vmem:[%s0 + $0x478] sm:$0xff]
  %v163 = vld [vmem:[%s0 + $0x480] sm:$0xff]
  %v164 = vld [vmem:[%s0 + $0x488] sm:$0xff]
  %v165 = vld [vmem:[%s0 + $0x490] sm:$0xff]
  %v166 = vld [vmem:[%s0 + $0x498] sm:$0xff]
  %v167 = vld [vmem:[%s0 + $0x4a0] sm:$0xff]
  %v168 = vld [vmem:[%s0 + $0x4a8] sm:$0xff]
  %v169 = vld [vmem:[%s0 + $0x4b0] sm:$0xff]
  %v170 = vld [vmem:[%s0 + $0x4b8] sm:$0xff]
  %v171 = vld [vmem:[%s0 + $0x4c0] sm:$0xff]
  %v172 = vld [vmem:[%s0 + $0x4c8] sm:$0xff]
  %v173 = vld [vmem:[%s0 + $0x4d0] sm:$0xff]
  %v174 = vld [vmem:[%s0 + $0x4d8] sm:$0xff]
  %v175 = vld [vmem:[%s0 + $0x4e0] sm:$0xff]
  %v176 = vld [vmem:[%s0 + $0x4e8] sm:$0xff]
  %v177 = vld [vmem:[%s0 + $0x4f0] sm:$0xff]
  %v178 = vld [vmem:[%s0 + $0x4f8] sm:$0xff]
  %v179 = vld [vmem:[%s0 + $0x500] sm:$0xff]
  %v180 = vld [vmem:[%s0 + $0x508] sm:$0xff]
  %v181 = vld [vmem:[%s0 + $0x510] sm:$0xff]
  %v182 = vld [vmem:[%s0 + $0x518] sm:$0xff]
  %v183 = vld [vmem:[%s0 + $0x520] sm:$0xff]
  %v184 = vld [vmem:[%s0 + $0x528] sm:$0xff]
  %v185 = vld [vmem:[%s0 + $0x530] sm:$0xff]
  %v186 = vld [vmem:[%s0 + $0x538] sm:$0xff]
  %v187 = vld [vmem:[%s0 + $0x540] sm:$0xff]
  %v188 = vld [vmem:[%s0 + $0x548] sm:$0xff]
  %v189 = vld [vmem:[%s0 + $0x550] sm:$0xff]
  %v190 = vld [vmem:[%s0 + $0x558] sm:$0xff]
  %v191 = vld [vmem:[%s0 + $0x560] sm:$0xff]
  %v192 = vld [vmem:[%s0 + $0x568] sm:$0xff]
  %v193 = vld [vmem:[%s0 + $0x570] sm:$0xff]
  %v194 = vld [vmem:[%s0 + $0x578] sm:$0xff]
  %v195 = vld [vmem:[%s0 + $0x580] sm:$0xff]
  %v196 = vld [vmem:[%s0 + $0x588] sm:$0xff]
  %v197 = vld [vmem:[%s0 + $0x590] sm:$0xff]
  %v198 = vld [vmem:[%s0 + $0x598] sm:$0xff]
  %v199 = vld [vmem:[%s0 + $0x5a0] sm:$0xff]
  %v200 = vld [vmem:[%s0 + $0x5a8] sm:$0xff]
  %v201 = vld [vmem:[%s0 + $0x5b0] sm:$0xff]
  %v202 = vld [vmem:[%s0 + $0x5b8] sm:$0xff]
  %v203 = vld [vmem:[%s0 + $0x5c0] sm:$0xff]
  %v204 = vld [vmem:[%s0 + $0x5c8] sm:$0xff]
  %v205 = vld [vmem:[%s0 + $0x5d0] sm:$0xff]
  %v206 = vld [vmem:[%s0 + $0x5d8] sm:$0xff]
  %v207 = vld [vmem:[%s0 + $0x5e0] sm:$0xff]
  %v208 = vld [vmem:[%s0 + $0x5e8] sm:$0xff]
  %v209 = vld [vmem:[%s0 + $0x5f0] sm:$0xff]
  %v210 = vld [vmem:[%s0 + $0x5f8] sm:$0xff]
  %v211 = vld [vmem:[%s0 + $0x600] sm:$0xff]
  %v212 = vld [vmem:[%s0 + $0x608] sm:$0xff]
  %v213 = vld [vmem:[%s0 + $0x610] sm:$0xff]
  %v214 = vld [vmem:[%s0 + $0x618] sm:$0xff]
  %v215 = vld [vmem:[%s0 + $0x620] sm:$0xff]
  %v216 = vld [vmem:[%s0 + $0x628] sm:$0xff]
  %v217 = vld [vmem:[%s0 + $0x630] sm:$0xff]
  %v218 = vld [vmem:[%s0 + $0x638] sm:$0xff]
  %v219 = vld [vmem:[%s0 + $0x640] sm:$0xff]
  %v220 = vld [vmem:[%s0 + $0x648] sm:$0xff]
  %v221 = vld [vmem:[%s0 + $0x650] sm:$0xff]
  %v222 = vld [vmem:[%s0 + $0x658] sm:$0xff]
  %v223 = vld [vmem:[%s0 + $0x660] sm:$0xff]
  %v224 = vld [vmem:[%s0 + $0x668] sm:$0xff]
  %v225 = vld [vmem:[%s0 + $0x670] sm:$0xff]
  %v226 = vld [vmem:[%s0 + $0x678] sm:$0xff]
  %v227 = vld [vmem:[%s0 + $0x680] sm:$0xff]
  %v228 = vld [vmem:[%s0 + $0x688] sm:$0xff]
  %v229 = vld [vmem:[%s0 + $0x690] sm:$0xff]
  %v230 = vld [vmem:[%s0 + $0x698] sm:$0xff]
  %v231 = vld [vmem:[%s0 + $0x6a0] sm:$0xff]
  %v232 = vld [vmem:[%s0 + $0x6a8] sm:$0xff]
  %v233 = vld [vmem:[%s0 + $0x6b0] sm:$0xff]
  %v234 = vld [vmem:[%s0 + $0x6b8] sm:$0xff]
  %vm235 = vcmask 719872
  %v237 = vsel %vm235, %v18, 0
  %239 = vmatpush.msra.mxu0 %v139
  %240 = vmatpush.msra.mxu0 %v131
  %241 = vmatpush.msra.mxu0 %v123
  %242 = vmatpush.msra.mxu0 %v115
  %243 = vmatpush.msra.mxu0 %v107
  %244 = vmatpush.msra.mxu0 %v99
  %245 = vmatpush.msra.mxu0 %v91
  %246 = vmatpush.msra.mxu0 %v83
  %247 = vmatpush.msra.mxu0 %v75
  %248 = vmatpush.msra.mxu0 %v67
  %249 = vmatpush.msra.mxu0 %v59
  %250 = vmatpush.msra.mxu0 %v51
  %251 = vmatpush.msra.mxu0 %v43
  %252 = vmatpush.msra.mxu0 %v35
  %253 = vmatpush.msra.mxu0 %v27
  %254 = vmatpush.msra.mxu0 %v19
  %255 = vmatmul.f32.gmra.mxu0 %v17
  %v256 = vpop.f32.mrf.mxu0
  %v257 = vadd.f32 0.0, %v256
  %258 = vdwg.mxu0
  %259 = vmatpush.msra.mxu0 0.0
  %260 = vmatpush.msra.mxu0 0.0
  %261 = vmatpush.msra.mxu0 0.0
  %262 = vmatpush.msra.mxu0 0.0
  %263 = vmatpush.msra.mxu0 0.0
  %264 = vmatpush.msra.mxu0 %v227
  %265 = vmatpush.msra.mxu0 %v219
  %266 = vmatpush.msra.mxu0 %v211
  %267 = vmatpush.msra.mxu0 %v203
  %268 = vmatpush.msra.mxu0 %v195
  %269 = vmatpush.msra.mxu0 %v187
  %270 = vmatpush.msra.mxu0 %v179
  %271 = vmatpush.msra.mxu0 %v171
  %272 = vmatpush.msra.mxu0 %v163
  %273 = vmatpush.msra.mxu0 %v155
  %274 = vmatpush.msra.mxu0 %v147
  %275 = vmatmul.f32.gmra.mxu0 %v237
  %v276 = vpop.f32.mrf.mxu0
  %v277 = vadd.f32 %v257, %v276
  %278 = vdwg.mxu0
  %279 = vmatpush.msra.mxu0 %v140
  %280 = vmatpush.msra.mxu0 %v132
  %281 = vmatpush.msra.mxu0 %v124
  %282 = vmatpush.msra.mxu0 %v116
  %283 = vmatpush.msra.mxu0 %v108
  %284 = vmatpush.msra.mxu0 %v100
  %285 = vmatpush.msra.mxu0 %v92
  %286 = vmatpush.msra.mxu0 %v84
  %287 = vmatpush.msra.mxu0 %v76
  %288 = vmatpush.msra.mxu0 %v68
  %289 = vmatpush.msra.mxu0 %v60
  %290 = vmatpush.msra.mxu0 %v52
  %291 = vmatpush.msra.mxu0 %v44
  %292 = vmatpush.msra.mxu0 %v36
  %293 = vmatpush.msra.mxu0 %v28
  %294 = vmatpush.msra.mxu0 %v20
  %295 = vmatmul.f32.gmra.mxu0 %v17
  %v296 = vpop.f32.mrf.mxu0
  %v297 = vadd.f32 0.0, %v296
  %298 = vdwg.mxu0
  %299 = vmatpush.msra.mxu0 0.0
  %300 = vmatpush.msra.mxu0 0.0
  %301 = vmatpush.msra.mxu0 0.0
  %302 = vmatpush.msra.mxu0 0.0
  %303 = vmatpush.msra.mxu0 0.0
  %304 = vmatpush.msra.mxu0 %v228
  %305 = vmatpush.msra.mxu0 %v220
  %306 = vmatpush.msra.mxu0 %v212
  %307 = vmatpush.msra.mxu0 %v204
  %308 = vmatpush.msra.mxu0 %v196
  %309 = vmatpush.msra.mxu0 %v188
  %310 = vmatpush.msra.mxu0 %v180
  %311 = vmatpush.msra.mxu0 %v172
  %312 = vmatpush.msra.mxu0 %v164
  %313 = vmatpush.msra.mxu0 %v156
  %314 = vmatpush.msra.mxu0 %v148
  %315 = vmatmul.f32.gmra.mxu0 %v237
  %v316 = vpop.f32.mrf.mxu0
  %v317 = vadd.f32 %v297, %v316
  %318 = vdwg.mxu0
  %319 = vmatpush.msra.mxu0 %v141
  %320 = vmatpush.msra.mxu0 %v133
  %321 = vmatpush.msra.mxu0 %v125
  %322 = vmatpush.msra.mxu0 %v117
  %323 = vmatpush.msra.mxu0 %v109
  %324 = vmatpush.msra.mxu0 %v101
  %325 = vmatpush.msra.mxu0 %v93
  %326 = vmatpush.msra.mxu0 %v85
  %327 = vmatpush.msra.mxu0 %v77
  %328 = vmatpush.msra.mxu0 %v69
  %329 = vmatpush.msra.mxu0 %v61
  %330 = vmatpush.msra.mxu0 %v53
  %331 = vmatpush.msra.mxu0 %v45
  %332 = vmatpush.msra.mxu0 %v37
  %333 = vmatpush.msra.mxu0 %v29
  %334 = vmatpush.msra.mxu0 %v21
  %335 = vmatmul.f32.gmra.mxu0 %v17
  %v336 = vpop.f32.mrf.mxu0
  %v337 = vadd.f32 0.0, %v336
  %338 = vdwg.mxu0
  %339 = vmatpush.msra.mxu0 0.0
  %340 = vmatpush.msra.mxu0 0.0
  %341 = vmatpush.msra.mxu0 0.0
  %342 = vmatpush.msra.mxu0 0.0
  %343 = vmatpush.msra.mxu0 0.0
  %344 = vmatpush.msra.mxu0 %v229
  %345 = vmatpush.msra.mxu0 %v221
  %346 = vmatpush.msra.mxu0 %v213
  %347 = vmatpush.msra.mxu0 %v205
  %348 = vmatpush.msra.mxu0 %v197
  %349 = vmatpush.msra.mxu0 %v189
  %350 = vmatpush.msra.mxu0 %v181
  %351 = vmatpush.msra.mxu0 %v173
  %352 = vmatpush.msra.mxu0 %v165
  %353 = vmatpush.msra.mxu0 %v157
  %354 = vmatpush.msra.mxu0 %v149
  %355 = vmatmul.f32.gmra.mxu0 %v237
  %v356 = vpop.f32.mrf.mxu0
  %v357 = vadd.f32 %v337, %v356
  %358 = vdwg.mxu0
  %359 = vmatpush.msra.mxu0 %v142
  %360 = vmatpush.msra.mxu0 %v134
  %361 = vmatpush.msra.mxu0 %v126
  %362 = vmatpush.msra.mxu0 %v118
  %363 = vmatpush.msra.mxu0 %v110
  %364 = vmatpush.msra.mxu0 %v102
  %365 = vmatpush.msra.mxu0 %v94
  %366 = vmatpush.msra.mxu0 %v86
  %367 = vmatpush.msra.mxu0 %v78
  %368 = vmatpush.msra.mxu0 %v70
  %369 = vmatpush.msra.mxu0 %v62
  %370 = vmatpush.msra.mxu0 %v54
  %371 = vmatpush.msra.mxu0 %v46
  %372 = vmatpush.msra.mxu0 %v38
  %373 = vmatpush.msra.mxu0 %v30
  %374 = vmatpush.msra.mxu0 %v22
  %375 = vmatmul.f32.gmra.mxu0 %v17
  %v376 = vpop.f32.mrf.mxu0
  %v377 = vadd.f32 0.0, %v376
  %378 = vdwg.mxu0
  %379 = vmatpush.msra.mxu0 0.0
  %380 = vmatpush.msra.mxu0 0.0
  %381 = vmatpush.msra.mxu0 0.0
  %382 = vmatpush.msra.mxu0 0.0
  %383 = vmatpush.msra.mxu0 0.0
  %384 = vmatpush.msra.mxu0 %v230
  %385 = vmatpush.msra.mxu0 %v222
  %386 = vmatpush.msra.mxu0 %v214
  %387 = vmatpush.msra.mxu0 %v206
  %388 = vmatpush.msra.mxu0 %v198
  %389 = vmatpush.msra.mxu0 %v190
  %390 = vmatpush.msra.mxu0 %v182
  %391 = vmatpush.msra.mxu0 %v174
  %392 = vmatpush.msra.mxu0 %v166
  %393 = vmatpush.msra.mxu0 %v158
  %394 = vmatpush.msra.mxu0 %v150
  %395 = vmatmul.f32.gmra.mxu0 %v237
  %v396 = vpop.f32.mrf.mxu0
  %v397 = vadd.f32 %v377, %v396
  %398 = vdwg.mxu0
  %399 = vmatpush.msra.mxu0 %v143
  %400 = vmatpush.msra.mxu0 %v135
  %401 = vmatpush.msra.mxu0 %v127
  %402 = vmatpush.msra.mxu0 %v119
  %403 = vmatpush.msra.mxu0 %v111
  %404 = vmatpush.msra.mxu0 %v103
  %405 = vmatpush.msra.mxu0 %v95
  %406 = vmatpush.msra.mxu0 %v87
  %407 = vmatpush.msra.mxu0 %v79
  %408 = vmatpush.msra.mxu0 %v71
  %409 = vmatpush.msra.mxu0 %v63
  %410 = vmatpush.msra.mxu0 %v55
  %411 = vmatpush.msra.mxu0 %v47
  %412 = vmatpush.msra.mxu0 %v39
  %413 = vmatpush.msra.mxu0 %v31
  %414 = vmatpush.msra.mxu0 %v23
  %415 = vmatmul.f32.gmra.mxu0 %v17
  %v416 = vpop.f32.mrf.mxu0
  %v417 = vadd.f32 0.0, %v416
  %418 = vdwg.mxu0
  %419 = vmatpush.msra.mxu0 0.0
  %420 = vmatpush.msra.mxu0 0.0
  %421 = vmatpush.msra.mxu0 0.0
  %422 = vmatpush.msra.mxu0 0.0
  %423 = vmatpush.msra.mxu0 0.0
  %424 = vmatpush.msra.mxu0 %v231
  %425 = vmatpush.msra.mxu0 %v223
  %426 = vmatpush.msra.mxu0 %v215
  %427 = vmatpush.msra.mxu0 %v207
  %428 = vmatpush.msra.mxu0 %v199
  %429 = vmatpush.msra.mxu0 %v191
  %430 = vmatpush.msra.mxu0 %v183
  %431 = vmatpush.msra.mxu0 %v175
  %432 = vmatpush.msra.mxu0 %v167
  %433 = vmatpush.msra.mxu0 %v159
  %434 = vmatpush.msra.mxu0 %v151
  %435 = vmatmul.f32.gmra.mxu0 %v237
  %v436 = vpop.f32.mrf.mxu0
  %v437 = vadd.f32 %v417, %v436
  %438 = vdwg.mxu0
  %439 = vmatpush.msra.mxu0 %v144
  %440 = vmatpush.msra.mxu0 %v136
  %441 = vmatpush.msra.mxu0 %v128
  %442 = vmatpush.msra.mxu0 %v120
  %443 = vmatpush.msra.mxu0 %v112
  %444 = vmatpush.msra.mxu0 %v104
  %445 = vmatpush.msra.mxu0 %v96
  %446 = vmatpush.msra.mxu0 %v88
  %447 = vmatpush.msra.mxu0 %v80
  %448 = vmatpush.msra.mxu0 %v72
  %449 = vmatpush.msra.mxu0 %v64
  %450 = vmatpush.msra.mxu0 %v56
  %451 = vmatpush.msra.mxu0 %v48
  %452 = vmatpush.msra.mxu0 %v40
  %453 = vmatpush.msra.mxu0 %v32
  %454 = vmatpush.msra.mxu0 %v24
  %455 = vmatmul.f32.gmra.mxu0 %v17
  %v456 = vpop.f32.mrf.mxu0
  %v457 = vadd.f32 0.0, %v456
  %458 = vdwg.mxu0
  %459 = vmatpush.msra.mxu0 0.0
  %460 = vmatpush.msra.mxu0 0.0
  %461 = vmatpush.msra.mxu0 0.0
  %462 = vmatpush.msra.mxu0 0.0
  %463 = vmatpush.msra.mxu0 0.0
  %464 = vmatpush.msra.mxu0 %v232
  %465 = vmatpush.msra.mxu0 %v224
  %466 = vmatpush.msra.mxu0 %v216
  %467 = vmatpush.msra.mxu0 %v208
  %468 = vmatpush.msra.mxu0 %v200
  %469 = vmatpush.msra.mxu0 %v192
  %470 = vmatpush.msra.mxu0 %v184
  %471 = vmatpush.msra.mxu0 %v176
  %472 = vmatpush.msra.mxu0 %v168
  %473 = vmatpush.msra.mxu0 %v160
  %474 = vmatpush.msra.mxu0 %v152
  %475 = vmatmul.f32.gmra.mxu0 %v237
  %v476 = vpop.f32.mrf.mxu0
  %v477 = vadd.f32 %v457, %v476
  %478 = vdwg.mxu0
  %479 = vmatpush.msra.mxu0 %v145
  %480 = vmatpush.msra.mxu0 %v137
  %481 = vmatpush.msra.mxu0 %v129
  %482 = vmatpush.msra.mxu0 %v121
  %483 = vmatpush.msra.mxu0 %v113
  %484 = vmatpush.msra.mxu0 %v105
  %485 = vmatpush.msra.mxu0 %v97
  %486 = vmatpush.msra.mxu0 %v89
  %487 = vmatpush.msra.mxu0 %v81
  %488 = vmatpush.msra.mxu0 %v73
  %489 = vmatpush.msra.mxu0 %v65
  %490 = vmatpush.msra.mxu0 %v57
  %491 = vmatpush.msra.mxu0 %v49
  %492 = vmatpush.msra.mxu0 %v41
  %493 = vmatpush.msra.mxu0 %v33
  %494 = vmatpush.msra.mxu0 %v25
  %495 = vmatmul.f32.gmra.mxu0 %v17
  %v496 = vpop.f32.mrf.mxu0
  %v497 = vadd.f32 0.0, %v496
  %498 = vdwg.mxu0
  %499 = vmatpush.msra.mxu0 0.0
  %500 = vmatpush.msra.mxu0 0.0
  %501 = vmatpush.msra.mxu0 0.0
  %502 = vmatpush.msra.mxu0 0.0
  %503 = vmatpush.msra.mxu0 0.0
  %504 = vmatpush.msra.mxu0 %v233
  %505 = vmatpush.msra.mxu0 %v225
  %506 = vmatpush.msra.mxu0 %v217
  %507 = vmatpush.msra.mxu0 %v209
  %508 = vmatpush.msra.mxu0 %v201
  %509 = vmatpush.msra.mxu0 %v193
  %510 = vmatpush.msra.mxu0 %v185
  %511 = vmatpush.msra.mxu0 %v177
  %512 = vmatpush.msra.mxu0 %v169
  %513 = vmatpush.msra.mxu0 %v161
  %514 = vmatpush.msra.mxu0 %v153
  %515 = vmatmul.f32.gmra.mxu0 %v237
  %v516 = vpop.f32.mrf.mxu0
  %v517 = vadd.f32 %v497, %v516
  %518 = vdwg.mxu0
  %519 = vmatpush.msra.mxu0 %v146
  %520 = vmatpush.msra.mxu0 %v138
  %521 = vmatpush.msra.mxu0 %v130
  %522 = vmatpush.msra.mxu0 %v122
  %523 = vmatpush.msra.mxu0 %v114
  %524 = vmatpush.msra.mxu0 %v106
  %525 = vmatpush.msra.mxu0 %v98
  %526 = vmatpush.msra.mxu0 %v90
  %527 = vmatpush.msra.mxu0 %v82
  %528 = vmatpush.msra.mxu0 %v74
  %529 = vmatpush.msra.mxu0 %v66
  %530 = vmatpush.msra.mxu0 %v58
  %531 = vmatpush.msra.mxu0 %v50
  %532 = vmatpush.msra.mxu0 %v42
  %533 = vmatpush.msra.mxu0 %v34
  %534 = vmatpush.msra.mxu0 %v26
  %535 = vmatmul.f32.gmra.mxu0 %v17
  %v536 = vpop.f32.mrf.mxu0
  %v537 = vadd.f32 0.0, %v536
  %538 = vdwg.mxu0
  %539 = vmatpush.msra.mxu0 0.0
  %540 = vmatpush.msra.mxu0 0.0
  %541 = vmatpush.msra.mxu0 0.0
  %542 = vmatpush.msra.mxu0 0.0
  %543 = vmatpush.msra.mxu0 0.0
  %544 = vmatpush.msra.mxu0 %v234
  %545 = vmatpush.msra.mxu0 %v226
  %546 = vmatpush.msra.mxu0 %v218
  %547 = vmatpush.msra.mxu0 %v210
  %548 = vmatpush.msra.mxu0 %v202
  %549 = vmatpush.msra.mxu0 %v194
  %550 = vmatpush.msra.mxu0 %v186
  %551 = vmatpush.msra.mxu0 %v178
  %552 = vmatpush.msra.mxu0 %v170
  %553 = vmatpush.msra.mxu0 %v162
  %554 = vmatpush.msra.mxu0 %v154
  %555 = vmatmul.f32.gmra.mxu0 %v237
  %v556 = vpop.f32.mrf.mxu0
  %v557 = vadd.f32 %v537, %v556
  %558 = vdwg.mxu0
  %v559 = vadd.f32 %v277, %v317
  %v560 = vadd.f32 %v559, %v357
  %v561 = vadd.f32 %v560, %v397
  %v562 = vadd.f32 %v561, %v437
  %v563 = vadd.f32 %v562, %v477
  %v564 = vadd.f32 %v563, %v517
  %v565 = vadd.f32 %v564, %v557
  %566 = vadd.xlane.f32.xlu0 %v565
  %v567 = vpop.xlane.xlu0 %566
  %v568 = vmul.f32 %v567, 0.0009765625
  %v569 = vsub.f32 %v277, %v568
  %v570 = vsub.f32 %v317, %v568
  %v571 = vsub.f32 %v357, %v568
  %v572 = vsub.f32 %v397, %v568
  %v573 = vsub.f32 %v437, %v568
  %v574 = vsub.f32 %v477, %v568
  %v575 = vsub.f32 %v517, %v568
  %v576 = vsub.f32 %v557, %v568
  %v577 = vmul.f32 %v569, %v569
  %v578 = vmul.f32 %v570, %v570
  %v579 = vmul.f32 %v571, %v571
  %v580 = vmul.f32 %v572, %v572
  %v581 = vmul.f32 %v573, %v573
  %v582 = vmul.f32 %v574, %v574
  %v583 = vmul.f32 %v575, %v575
  %v584 = vmul.f32 %v576, %v576
  %v585 = vadd.f32 %v577, %v578
  %v586 = vadd.f32 %v585, %v579
  %v587 = vadd.f32 %v586, %v580
  %v588 = vadd.f32 %v587, %v581
  %v589 = vadd.f32 %v588, %v582
  %v590 = vadd.f32 %v589, %v583
  %v591 = vadd.f32 %v590, %v584
  %592 = vadd.xlane.f32.xlu0 %v591
  %v593 = vpop.xlane.xlu0 %592
  %v594 = vmul.f32 %v593, 0.0009765625
  %v595 = vld [vmem:[%s2] sm:$0xff]
  %v596 = vadd.f32 %v594, 1e-05
  %v597 = vrsqrt.pop %v596
  %v598 = vmul.f32 %v597, %v596
  %v599 = vmul.f32 %v598, %v597
  %v600 = vmul.f32 0.5, %v599
  %v601 = vsub.f32 1.5, %v600
  %v602 = vmul.f32 %v597, %v601
  %vm603 = vweird.f32 %v596
  %vm604 = vweird.f32 %v597
  %vm605 = vmor %vm603, %vm604
  %v606 = vsel %vm605, %v597, %v602
  %v607 = vmul.f32 %v595, %v606
  %v608 = vld [vmem:[%s3] sm:$0xff]
  %v609 = vmul.f32 %v568, %v607
  %v610 = vsub.f32 %v608, %v609
  %612 = vset.pattern.permute.xlu0 0
  %613 = vperm.xlu0 %612, %v607
  %v614 = vpop.permute.xlu0 %613
  %v616 = vmul.f32 %v277, %v614
  %v617 = vmul.f32 %v317, %v614
  %v618 = vmul.f32 %v357, %v614
  %v619 = vmul.f32 %v397, %v614
  %v620 = vmul.f32 %v437, %v614
  %v621 = vmul.f32 %v477, %v614
  %v622 = vmul.f32 %v517, %v614
  %v623 = vmul.f32 %v557, %v614
  %625 = vset.pattern.permute.xlu0 0
  %626 = vperm.xlu0 %625, %v610
  %v627 = vpop.permute.xlu0 %626
  %v629 = vadd.f32 %v616, %v627
  %v630 = vadd.f32 %v617, %v627
  %v631 = vadd.f32 %v618, %v627
  %v632 = vadd.f32 %v619, %v627
  %v633 = vadd.f32 %v620, %v627
  %v634 = vadd.f32 %v621, %v627
  %v635 = vadd.f32 %v622, %v627
  %v636 = vadd.f32 %v623, %v627
  %v637 = vmax.f32 %v629, 0.0
  %v638 = vmax.f32 %v630, 0.0
  %v639 = vmax.f32 %v631, 0.0
  %v640 = vmax.f32 %v632, 0.0
  %v641 = vmax.f32 %v633, 0.0
  %v642 = vmax.f32 %v634, 0.0
  %v643 = vmax.f32 %v635, 0.0
  %v644 = vmax.f32 %v636, 0.0
  %645 = vst [vmem:[%s4] sm:$0xff] %v637
  %646 = vst [vmem:[%s4 + $0x8] sm:$0xff] %v638
  %647 = vst [vmem:[%s4 + $0x10] sm:$0xff] %v639
  %648 = vst [vmem:[%s4 + $0x18] sm:$0xff] %v640
  %649 = vst [vmem:[%s4 + $0x20] sm:$0xff] %v641
  %650 = vst [vmem:[%s4 + $0x28] sm:$0xff] %v642
  %651 = vst [vmem:[%s4 + $0x30] sm:$0xff] %v643
  %652 = vst [vmem:[%s4 + $0x38] sm:$0xff] %v644
  // Predicated region
  $region18: #{_lambda_.8} parent=0 // pred_check
    _
  $region19: #{_lambda_.8} parent=0 // pred_check_branch
    %654 = sbr.rel (0) target = $region21
  $region20: #{_lambda_.8} parent=0 // pred_region
    _
  $region21: #{_lambda_.8} parent=0 // pred_fallthru
    _
  // Predicated region
  $region22: #{_lambda_.8} parent=0 // pred_check
    _
  $region23: #{_lambda_.8} parent=0 // pred_check_branch
    %656 = sbr.rel (0) target = $region25
  $region24: #{_lambda_.8} parent=0 // pred_region
    _
  $region25: #{_lambda_.8} parent=0 // pred_fallthru
    _

</llo_original>
